<compile_context>
chip_gen: v7x
topology: tpu7x:2x2x1
jax: 0.10.0
libtpu: 0.0.40
codegen_flags: <defaults>
</compile_context>

<pallas_src>
import functools

import jax
import jax.numpy as jnp
from jax.experimental import pallas as pl
from jax.experimental.pallas import tpu as pltpu


def _round_up(x, m):
    return (x + m - 1) // m * m


# Rows of the packed parameter slab ([8, 4*FP], f32).
_ROW_WE_DST = 0    # edge-projection weight, dst half          lanes [0:F)
_ROW_WE_SRC = 1    # edge-projection weight, src half          lanes [0:F)
_ROW_B_PROJ = 2    # project_node bias                         lanes [0:G)
_ROW_BN_SCALE = 3  # folded BN scale = gamma * rsqrt(var+eps)  lanes [0:F)
_ROW_BN_SHIFT = 4  # folded BN shift = beta - mean*scale       lanes [0:F)
_ROW_GRU_BIAS = 5  # [b_ir+b_hr | b_iz+b_hz | b_in | b_hn]     lanes [0:4*FP)
_ROW_BE = 6        # edge-projection bias (scalar)             lane 0


def gnn_layer_kernel(h_ref, hfull_ref, ht_ref, adj_ref, wgru_ref, wproj_ref,
                     slab_ref, out_ref):
    f32 = jnp.float32
    cdt = wgru_ref.dtype                    # MXU compute dtype (bf16 or f32)
    FP = h_ref.shape[1]                     # padded node-feat width (mult of 128)
    GP = wproj_ref.shape[1]                 # padded graph-feat width (mult of 128)

    h = h_ref[...]                          # [TM, FP] f32   (dst tile, kept f32)
    adj = adj_ref[...].astype(f32)          # [TM, NP] 0/1 mask (exact in bf16)
    slab = slab_ref[...]                    # [8, 4*FP] f32 packed params

    we_dst = slab[_ROW_WE_DST:_ROW_WE_DST + 1, 0:FP]        # [1, FP]
    b_proj = slab[_ROW_B_PROJ:_ROW_B_PROJ + 1, 0:GP]        # [1, GP]
    bn_scale = slab[_ROW_BN_SCALE:_ROW_BN_SCALE + 1, 0:FP]  # [1, FP]
    bn_shift = slab[_ROW_BN_SHIFT:_ROW_BN_SHIFT + 1, 0:FP]  # [1, FP]
    gru_bias = slab[_ROW_GRU_BIAS:_ROW_GRU_BIAS + 1, :]     # [1, 4*FP]
    be = slab[_ROW_BE:_ROW_BE + 1, 0:1]                     # [1, 1]

    # ---- project_edge: logit[d,s] = LeakyReLU(p[d] + q[s] + be) -------------
    # p: VPU multiply + lane-reduce (no lane-width-1 MXU matmul).
    p = jnp.sum(h * we_dst, axis=1, keepdims=True) + be     # [TM, 1] f32
    # q: one small MXU dot against the wrapper-transposed feature slab gives a
    # lane-dense [*, NP] row directly (no [N,1]->[1,N] transpose).  8 slab rows
    # are fed for robust (8-sublane) lowering; only the we_src row is used.
    q8 = jnp.dot(slab[0:8, 0:FP].astype(cdt), ht_ref[...],
                 preferred_element_type=f32)                 # [8, NP]
    q = q8[_ROW_WE_SRC:_ROW_WE_SRC + 1, :]                   # [1, NP]
    logits = p + q
    logits = jnp.where(logits >= 0, logits, 0.01 * logits)   # LeakyReLU

    # ---- edge softmax over incoming edges of each dst node (masked, f32) ----
    masked = jnp.where(adj > 0, logits, jnp.float32(-1e30))
    m = jnp.max(masked, axis=1, keepdims=True)
    e = jnp.exp(masked - m) * adj
    denom = jnp.sum(e, axis=1, keepdims=True)
    attn = e / jnp.maximum(denom, jnp.float32(1e-20))        # [TM, NP]
    rowsum = jnp.sum(attn, axis=1, keepdims=True)            # 1 (0 if isolated)

    # ---- aggregation: attn @ (h @ Wp + bp) == (attn @ h) @ Wp + rowsum*bp ----
    m1 = jnp.dot(attn.astype(cdt), hfull_ref[...], preferred_element_type=f32)
    c = jnp.dot(m1.astype(cdt), wproj_ref[...], preferred_element_type=f32)
    c = c + rowsum * b_proj                                  # [TM, GP]
    # ELU, overflow-safe (exp only evaluated on the non-positive branch values).
    context = jnp.where(c > 0, c, jnp.exp(jnp.minimum(c, 0.0)) - 1.0)

    # ---- GRUCell: single fused MXU dot, gate segments lane-aligned at FP ----
    #   [context | h] @ [[Wih_r Wih_z Wih_n   0  ],
    #                    [Whh_r Whh_z   0   Whh_n]]
    lhs = jnp.concatenate([context, h], axis=1).astype(cdt)  # [TM, GP+FP]
    g = jnp.dot(lhs, wgru_ref[...], preferred_element_type=f32) + gru_bias
    r = jax.nn.sigmoid(g[:, 0:FP])                           # gi_r + gh_r + b
    z = jax.nn.sigmoid(g[:, FP:2 * FP])                      # gi_z + gh_z + b
    n = jnp.tanh(g[:, 2 * FP:3 * FP] + r * g[:, 3 * FP:4 * FP])
    new_h = (1.0 - z) * n + z * h
    act = jnp.maximum(new_h, 0.0)                            # ReLU

    # ---- BatchNorm1d (eval) folded to scale/shift ----------------------------
    out_ref[...] = act * bn_scale + bn_shift


@functools.partial(jax.jit, static_argnames=("tm", "compute_dtype"))
def gnn_layer(node_feats, adj, params, *, tm=32, compute_dtype=jnp.bfloat16):
    """Runs the fused GNNLayer kernel. Returns [N, F] float32."""
    f32 = jnp.float32
    N, F = node_feats.shape
    G = params["w_proj"].shape[1]
    FP = _round_up(F, 128)
    GP = _round_up(G, 128)
    NP = _round_up(N, 128)
    if NP % tm:
        NP = _round_up(NP, tm)
    assert tm % 8 == 0 and NP % tm == 0

    def pad2(x, rows, cols):
        x = jnp.asarray(x, f32)
        return jnp.pad(x, ((0, rows - x.shape[0]), (0, cols - x.shape[1])))

    # Graph tensors.  h is duplicated in compute dtype (+ transposed) as pure
    # layout plumbing for the MXU; the f32 copy is the one that is dst-tiled.
    h_pad = pad2(node_feats, NP, FP)                     # f32, tiled over dst
    h_cd = h_pad.astype(compute_dtype)                   # resident source slab
    ht_cd = h_cd.T                                       # resident, for the q row
    adj_cd = pad2(adj, NP, NP).astype(compute_dtype)     # 0/1, exact in bf16

    # Fused GRU weight [GP+FP, 4*FP]; each gate in its own 128-lane segment.
    w_ih = jnp.asarray(params["w_ih"], f32)              # [G, 3F]  gates (r,z,n)
    w_hh = jnp.asarray(params["w_hh"], f32)              # [F, 3F]
    w_gru = jnp.zeros((GP + FP, 4 * FP), f32)
    for k in range(3):                                   # w_ih -> segments 0,1,2
        w_gru = w_gru.at[0:G, k * FP:k * FP + F].set(w_ih[:, k * F:(k + 1) * F])
    w_gru = w_gru.at[GP:GP + F, 0:F].set(w_hh[:, 0:F])                   # r
    w_gru = w_gru.at[GP:GP + F, FP:FP + F].set(w_hh[:, F:2 * F])         # z
    w_gru = w_gru.at[GP:GP + F, 3 * FP:3 * FP + F].set(w_hh[:, 2 * F:])  # n (sep)
    w_gru = w_gru.astype(compute_dtype)

    w_proj = pad2(params["w_proj"], FP, GP).astype(compute_dtype)

    # Packed bias / folded-BN slab: one small DMA instead of ~9 tiny inputs.
    bn_scale = jnp.asarray(params["gamma"], f32) * jax.lax.rsqrt(
        jnp.asarray(params["run_var"], f32) + 1e-5)
    bn_shift = jnp.asarray(params["beta"], f32) - jnp.asarray(
        params["run_mean"], f32) * bn_scale
    b_ih = jnp.asarray(params["b_ih"], f32).reshape(3 * F)
    b_hh = jnp.asarray(params["b_hh"], f32).reshape(3 * F)
    slab = jnp.zeros((8, 4 * FP), f32)
    slab = slab.at[_ROW_WE_DST, 0:F].set(jnp.asarray(params["we_dst"], f32).reshape(F))
    slab = slab.at[_ROW_WE_SRC, 0:F].set(jnp.asarray(params["we_src"], f32).reshape(F))
    slab = slab.at[_ROW_B_PROJ, 0:G].set(jnp.asarray(params["b_proj"], f32).reshape(G))
    slab = slab.at[_ROW_BN_SCALE, 0:F].set(bn_scale.reshape(F))
    slab = slab.at[_ROW_BN_SHIFT, 0:F].set(bn_shift.reshape(F))
    slab = slab.at[_ROW_GRU_BIAS, 0:F].set(b_ih[0:F] + b_hh[0:F])
    slab = slab.at[_ROW_GRU_BIAS, FP:FP + F].set(b_ih[F:2 * F] + b_hh[F:2 * F])
    slab = slab.at[_ROW_GRU_BIAS, 2 * FP:2 * FP + F].set(b_ih[2 * F:3 * F])
    slab = slab.at[_ROW_GRU_BIAS, 3 * FP:3 * FP + F].set(b_hh[2 * F:3 * F])
    slab = slab.at[_ROW_BE, 0].set(jnp.asarray(params["be"], f32).reshape(()))

    resident = lambda i: (0, 0)
    out = pl.pallas_call(
        gnn_layer_kernel,
        out_shape=jax.ShapeDtypeStruct((NP, FP), f32),
        grid=(NP // tm,),
        in_specs=[
            pl.BlockSpec((tm, FP), lambda i: (i, 0)),      # h   (dst tile, f32)
            pl.BlockSpec((NP, FP), resident),              # h   (all src, cdt)
            pl.BlockSpec((FP, NP), resident),              # h^T (cdt)
            pl.BlockSpec((tm, NP), lambda i: (i, 0)),      # adjacency tile (cdt)
            pl.BlockSpec((GP + FP, 4 * FP), resident),     # fused GRU weights
            pl.BlockSpec((FP, GP), resident),              # w_proj
            pl.BlockSpec((8, 4 * FP), resident),           # packed bias/BN slab
        ],
        out_specs=pl.BlockSpec((tm, FP), lambda i: (i, 0)),
        # dst tiles are independent -> parallel (v7x 2-TC / megacore sharding).
        # For large N raise vmem_limit_bytes or shrink tm so the [tm, NP] slabs fit.
        compiler_params=pltpu.CompilerParams(dimension_semantics=("parallel",)),
    )(h_pad, h_cd, ht_cd, adj_cd, w_gru, w_proj, slab)
    return out[:N, :F]


def gnn_layer_ref(node_feats, adj, p):
    """Pure-JAX f32 reference (original, unfused math) for correctness checks."""
    h = jnp.asarray(node_feats, jnp.float32)
    F = h.shape[1]
    logits = h @ p["we_dst"] + (h @ p["we_src"]).T + p["be"]
    logits = jnp.where(logits >= 0, logits, 0.01 * logits)
    masked = jnp.where(adj > 0, logits, -1e30)
    m = masked.max(axis=1, keepdims=True)
    e = jnp.exp(masked - m) * adj
    attn = e / jnp.maximum(e.sum(axis=1, keepdims=True), 1e-20)
    hv = h @ p["w_proj"] + p["b_proj"]
    c = attn @ hv
    ctx = jnp.where(c > 0, c, jnp.exp(c) - 1.0)
    gi = ctx @ p["w_ih"] + p["b_ih"]
    gh = h @ p["w_hh"] + p["b_hh"]
    r = jax.nn.sigmoid(gi[:, :F] + gh[:, :F])
    z = jax.nn.sigmoid(gi[:, F:2 * F] + gh[:, F:2 * F])
    n = jnp.tanh(gi[:, 2 * F:] + r * gh[:, 2 * F:])
    new_h = (1.0 - z) * n + z * h
    act = jnp.maximum(new_h, 0.0)
    inv = jax.lax.rsqrt(p["run_var"] + 1e-5)
    return (act - p["run_mean"]) * inv * p["gamma"] + p["beta"]


if __name__ == "__main__":
    # N nodes; node_feat_size == graph_feat_size == F (required: the module
    # applies BatchNorm1d(graph_feat_size) to a GRU hidden of node_feat_size).
    N, F, G = 80, 32, 32

    key = jax.random.PRNGKey(0)
    keys = jax.random.split(key, 16)

    node_feats = jax.random.normal(keys[0], (N, F), jnp.float32)

    # Graph: each node receives edges from its +-1 and +-2 ring neighbours.
    idx = jnp.arange(N)
    src = jnp.concatenate([(idx + 1) % N, (idx - 1) % N, (idx + 2) % N, (idx - 2) % N])
    dst = jnp.concatenate([idx, idx, idx, idx])
    adj = jnp.zeros((N, N), jnp.float32).at[dst, src].set(1.0)   # adj[d, s]

    params = {
        # project_edge: Linear(2F -> 1), weight split into dst / src halves
        "we_dst": 0.2 * jax.random.normal(keys[1], (F, 1), jnp.float32),
        "we_src": 0.2 * jax.random.normal(keys[2], (F, 1), jnp.float32),
        "be":     0.1 * jax.random.normal(keys[3], (), jnp.float32),
        # project_node: Linear(F -> G)
        "w_proj": 0.2 * jax.random.normal(keys[4], (F, G), jnp.float32),
        "b_proj": 0.1 * jax.random.normal(keys[5], (G,), jnp.float32),
        # GRUCell(input=G, hidden=F): weights pre-transposed to [in, 3*hidden],
        # gate order (r, z, n) as in PyTorch.
        "w_ih":   0.2 * jax.random.normal(keys[6], (G, 3 * F), jnp.float32),
        "b_ih":   0.1 * jax.random.normal(keys[7], (3 * F,), jnp.float32),
        "w_hh":   0.2 * jax.random.normal(keys[8], (F, 3 * F), jnp.float32),
        "b_hh":   0.1 * jax.random.normal(keys[9], (3 * F,), jnp.float32),
        # BatchNorm1d(F), eval mode
        "gamma":    jax.random.uniform(keys[10], (F,), jnp.float32, 0.5, 1.5),
        "beta":     0.1 * jax.random.normal(keys[11], (F,), jnp.float32),
        "run_mean": 0.1 * jax.random.normal(keys[12], (F,), jnp.float32),
        "run_var":  jax.random.uniform(keys[13], (F,), jnp.float32, 0.5, 1.5),
    }

    ref = gnn_layer_ref(node_feats, adj, params)

    # f32 compute path: proves the fused/refactored kernel math is exact.
    out_f32 = jax.block_until_ready(
        gnn_layer(node_feats, adj, params, tm=32, compute_dtype=jnp.float32))
    assert out_f32.shape == (N, F) and out_f32.dtype == jnp.float32
    assert jnp.allclose(out_f32, ref, rtol=1e-3, atol=1e-3), (
        f"f32 max abs diff {jnp.max(jnp.abs(out_f32 - ref))}")

    # bf16 MXU-operand path (default / fast).  Softmax / gates stay f32; the
    # looser tolerance reflects bf16 input rounding of the matmul operands.
    out_bf16 = jax.block_until_ready(
        gnn_layer(node_feats, adj, params, tm=32, compute_dtype=jnp.bfloat16))
    assert out_bf16.shape == (N, F)
    assert jnp.allclose(out_bf16, ref, rtol=1e-1, atol=1e-1), (
        f"bf16 max abs diff {jnp.max(jnp.abs(out_bf16 - ref))}")

    print("KERNEL_OK")
</pallas_src>

<mosaic_0001>
module attributes {stable_mosaic.version = 11 : i64} {
  func.func @gnn_layer_kernel(%arg0: i32, %arg1: memref<32x128xf32, #tpu.memory_space<vmem>>, %arg2: memref<128x128xf32, #tpu.memory_space<vmem>>, %arg3: memref<128x128xf32, #tpu.memory_space<vmem>>, %arg4: memref<32x128xf32, #tpu.memory_space<vmem>>, %arg5: memref<256x512xf32, #tpu.memory_space<vmem>>, %arg6: memref<128x128xf32, #tpu.memory_space<vmem>>, %arg7: memref<8x512xf32, #tpu.memory_space<vmem>>, %arg8: memref<32x128xf32, #tpu.memory_space<vmem>>) attributes {dimension_semantics = [#tpu.dimension_semantics<parallel>], iteration_bounds = array<i64: 4>, scalar_prefetch = 0 : i64, scratch_operands = 0 : i64, tpu.core_type = #tpu.core_type<tc>, window_params = [{transform_indices = @transform_0, window_bounds = array<i64: 32, 128>}, {pipeline_mode = #tpu.pipeline_mode<synchronous>, transform_indices = @transform_1, window_bounds = array<i64: 128, 128>}, {pipeline_mode = #tpu.pipeline_mode<synchronous>, transform_indices = @transform_2, window_bounds = array<i64: 128, 128>}, {transform_indices = @transform_3, window_bounds = array<i64: 32, 128>}, {pipeline_mode = #tpu.pipeline_mode<synchronous>, transform_indices = @transform_4, window_bounds = array<i64: 256, 512>}, {pipeline_mode = #tpu.pipeline_mode<synchronous>, transform_indices = @transform_5, window_bounds = array<i64: 128, 128>}, {pipeline_mode = #tpu.pipeline_mode<synchronous>, transform_indices = @transform_6, window_bounds = array<i64: 8, 512>}, {transform_indices = @transform_7, window_bounds = array<i64: 32, 128>}]} {
    %c0 = arith.constant 0 : index
    %c0_0 = arith.constant 0 : index
    %0 = vector.load %arg1[%c0, %c0_0] : memref<32x128xf32, #tpu.memory_space<vmem>>, vector<32x128xf32>
    %c0_1 = arith.constant 0 : index
    %c0_2 = arith.constant 0 : index
    %1 = vector.load %arg4[%c0_1, %c0_2] : memref<32x128xf32, #tpu.memory_space<vmem>>, vector<32x128xf32>
    %c0_3 = arith.constant 0 : index
    %c0_4 = arith.constant 0 : index
    %2 = vector.load %arg7[%c0_3, %c0_4] : memref<8x512xf32, #tpu.memory_space<vmem>>, vector<8x512xf32>
    %3 = vector.extract_strided_slice %2 {offsets = [0, 0], sizes = [1, 128], strides = [1, 1]} : vector<8x512xf32> to vector<1x128xf32>
    %4 = vector.extract_strided_slice %2 {offsets = [2, 0], sizes = [1, 128], strides = [1, 1]} : vector<8x512xf32> to vector<1x128xf32>
    %5 = vector.extract_strided_slice %2 {offsets = [3, 0], sizes = [1, 128], strides = [1, 1]} : vector<8x512xf32> to vector<1x128xf32>
    %6 = vector.extract_strided_slice %2 {offsets = [4, 0], sizes = [1, 128], strides = [1, 1]} : vector<8x512xf32> to vector<1x128xf32>
    %7 = vector.extract_strided_slice %2 {offsets = [5, 0], sizes = [1, 512], strides = [1, 1]} : vector<8x512xf32> to vector<1x512xf32>
    %8 = vector.extract_strided_slice %2 {offsets = [6, 0], sizes = [1, 1], strides = [1, 1]} : vector<8x512xf32> to vector<1x1xf32>
    %9 = vector.broadcast %3 : vector<1x128xf32> to vector<32x128xf32>
    %10 = arith.mulf %0, %9 : vector<32x128xf32>
    %cst = arith.constant dense<0.000000e+00> : vector<32xf32>
    %11 = vector.multi_reduction <add>, %10, %cst [1] : vector<32x128xf32> to vector<32xf32>
    %12 = vector.shape_cast %11 : vector<32xf32> to vector<32x1xf32>
    %13 = vector.broadcast %8 : vector<1x1xf32> to vector<32x1xf32>
    %14 = arith.addf %12, %13 : vector<32x1xf32>
    %15 = vector.extract_strided_slice %2 {offsets = [0, 0], sizes = [8, 128], strides = [1, 1]} : vector<8x512xf32> to vector<8x128xf32>
    %c0_5 = arith.constant 0 : index
    %c0_6 = arith.constant 0 : index
    %16 = vector.load %arg3[%c0_5, %c0_6] : memref<128x128xf32, #tpu.memory_space<vmem>>, vector<128x128xf32>
    %cst_7 = arith.constant dense<0.000000e+00> : vector<8x128xf32>
    %17 = tpu.matmul %15, %16, %cst_7 {dimension_numbers = #tpu.dot_dimension_numbers<[1], [0], [0], [1], [0, 0, 1, 1], [], []>} : vector<8x128xf32>, vector<128x128xf32>, vector<8x128xf32> -> vector<8x128xf32>
    %18 = vector.extract_strided_slice %17 {offsets = [1, 0], sizes = [1, 128], strides = [1, 1]} : vector<8x128xf32> to vector<1x128xf32>
    %19 = vector.broadcast %14 : vector<32x1xf32> to vector<32x128xf32>
    %20 = vector.broadcast %18 : vector<1x128xf32> to vector<32x128xf32>
    %21 = arith.addf %19, %20 : vector<32x128xf32>
    %cst_8 = arith.constant 0.000000e+00 : f32
    %22 = vector.broadcast %cst_8 : f32 to vector<32x128xf32>
    %23 = arith.cmpf oge, %21, %22 : vector<32x128xf32>
    %cst_9 = arith.constant 0.00999999977 : f32
    %24 = vector.broadcast %cst_9 : f32 to vector<32x128xf32>
    %25 = arith.mulf %24, %21 : vector<32x128xf32>
    %26 = arith.select %23, %21, %25 : vector<32x128xi1>, vector<32x128xf32>
    %cst_10 = arith.constant 0.000000e+00 : f32
    %27 = vector.broadcast %cst_10 : f32 to vector<32x128xf32>
    %28 = arith.cmpf ogt, %1, %27 : vector<32x128xf32>
    %cst_11 = arith.constant -1.000000e+30 : f32
    %29 = vector.broadcast %cst_11 : f32 to vector<32x128xf32>
    %30 = arith.select %28, %26, %29 : vector<32x128xi1>, vector<32x128xf32>
    %cst_12 = arith.constant dense<0xFF800000> : vector<32xf32>
    %31 = vector.multi_reduction <maximumf>, %30, %cst_12 [1] : vector<32x128xf32> to vector<32xf32>
    %32 = vector.shape_cast %31 : vector<32xf32> to vector<32x1xf32>
    %33 = vector.broadcast %32 : vector<32x1xf32> to vector<32x128xf32>
    %34 = arith.subf %30, %33 : vector<32x128xf32>
    %35 = math.exp %34 : vector<32x128xf32>
    %36 = arith.mulf %35, %1 : vector<32x128xf32>
    %cst_13 = arith.constant dense<0.000000e+00> : vector<32xf32>
    %37 = vector.multi_reduction <add>, %36, %cst_13 [1] : vector<32x128xf32> to vector<32xf32>
    %38 = vector.shape_cast %37 : vector<32xf32> to vector<32x1xf32>
    %cst_14 = arith.constant 9.99999968E-21 : f32
    %39 = vector.broadcast %cst_14 : f32 to vector<32x1xf32>
    %40 = arith.maximumf %38, %39 : vector<32x1xf32>
    %41 = vector.broadcast %40 : vector<32x1xf32> to vector<32x128xf32>
    %42 = arith.divf %36, %41 : vector<32x128xf32>
    %cst_15 = arith.constant dense<0.000000e+00> : vector<32xf32>
    %43 = vector.multi_reduction <add>, %42, %cst_15 [1] : vector<32x128xf32> to vector<32xf32>
    %44 = vector.shape_cast %43 : vector<32xf32> to vector<32x1xf32>
    %c0_16 = arith.constant 0 : index
    %c0_17 = arith.constant 0 : index
    %45 = vector.load %arg2[%c0_16, %c0_17] : memref<128x128xf32, #tpu.memory_space<vmem>>, vector<128x128xf32>
    %cst_18 = arith.constant dense<0.000000e+00> : vector<32x128xf32>
    %46 = tpu.matmul %42, %45, %cst_18 {dimension_numbers = #tpu.dot_dimension_numbers<[1], [0], [0], [1], [0, 0, 1, 1], [], []>} : vector<32x128xf32>, vector<128x128xf32>, vector<32x128xf32> -> vector<32x128xf32>
    %c0_19 = arith.constant 0 : index
    %c0_20 = arith.constant 0 : index
    %47 = vector.load %arg6[%c0_19, %c0_20] : memref<128x128xf32, #tpu.memory_space<vmem>>, vector<128x128xf32>
    %cst_21 = arith.constant dense<0.000000e+00> : vector<32x128xf32>
    %48 = tpu.matmul %46, %47, %cst_21 {dimension_numbers = #tpu.dot_dimension_numbers<[1], [0], [0], [1], [0, 0, 1, 1], [], []>} : vector<32x128xf32>, vector<128x128xf32>, vector<32x128xf32> -> vector<32x128xf32>
    %49 = vector.broadcast %44 : vector<32x1xf32> to vector<32x128xf32>
    %50 = vector.broadcast %4 : vector<1x128xf32> to vector<32x128xf32>
    %51 = arith.mulf %49, %50 : vector<32x128xf32>
    %52 = arith.addf %48, %51 : vector<32x128xf32>
    %cst_22 = arith.constant 0.000000e+00 : f32
    %53 = vector.broadcast %cst_22 : f32 to vector<32x128xf32>
    %54 = arith.cmpf ogt, %52, %53 : vector<32x128xf32>
    %cst_23 = arith.constant 0.000000e+00 : f32
    %55 = vector.broadcast %cst_23 : f32 to vector<32x128xf32>
    %56 = arith.minimumf %52, %55 : vector<32x128xf32>
    %57 = math.exp %56 : vector<32x128xf32>
    %cst_24 = arith.constant 1.000000e+00 : f32
    %58 = vector.broadcast %cst_24 : f32 to vector<32x128xf32>
    %59 = arith.subf %57, %58 : vector<32x128xf32>
    %60 = arith.select %54, %52, %59 : vector<32x128xi1>, vector<32x128xf32>
    %61 = tpu.concatenate %60, %0 in 1 : vector<32x128xf32>, vector<32x128xf32> -> vector<32x256xf32>
    %c0_25 = arith.constant 0 : index
    %c0_26 = arith.constant 0 : index
    %62 = vector.load %arg5[%c0_25, %c0_26] : memref<256x512xf32, #tpu.memory_space<vmem>>, vector<256x512xf32>
    %cst_27 = arith.constant dense<0.000000e+00> : vector<32x512xf32>
    %63 = tpu.matmul %61, %62, %cst_27 {dimension_numbers = #tpu.dot_dimension_numbers<[1], [0], [0], [1], [0, 0, 1, 1], [], []>} : vector<32x256xf32>, vector<256x512xf32>, vector<32x512xf32> -> vector<32x512xf32>
    %64 = vector.broadcast %7 : vector<1x512xf32> to vector<32x512xf32>
    %65 = arith.addf %63, %64 : vector<32x512xf32>
    %66 = vector.extract_strided_slice %65 {offsets = [0, 0], sizes = [32, 128], strides = [1, 1]} : vector<32x512xf32> to vector<32x128xf32>
    %67 = arith.negf %66 : vector<32x128xf32>
    %68 = math.exp %67 : vector<32x128xf32>
    %cst_28 = arith.constant 1.000000e+00 : f32
    %69 = vector.broadcast %cst_28 : f32 to vector<32x128xf32>
    %70 = arith.addf %69, %68 : vector<32x128xf32>
    %71 = arith.divf %69, %70 : vector<32x128xf32>
    %72 = vector.extract_strided_slice %65 {offsets = [0, 128], sizes = [32, 128], strides = [1, 1]} : vector<32x512xf32> to vector<32x128xf32>
    %73 = arith.negf %72 : vector<32x128xf32>
    %74 = math.exp %73 : vector<32x128xf32>
    %cst_29 = arith.constant 1.000000e+00 : f32
    %75 = vector.broadcast %cst_29 : f32 to vector<32x128xf32>
    %76 = arith.addf %75, %74 : vector<32x128xf32>
    %77 = arith.divf %75, %76 : vector<32x128xf32>
    %78 = vector.extract_strided_slice %65 {offsets = [0, 256], sizes = [32, 128], strides = [1, 1]} : vector<32x512xf32> to vector<32x128xf32>
    %79 = vector.extract_strided_slice %65 {offsets = [0, 384], sizes = [32, 128], strides = [1, 1]} : vector<32x512xf32> to vector<32x128xf32>
    %80 = arith.mulf %71, %79 : vector<32x128xf32>
    %81 = arith.addf %78, %80 : vector<32x128xf32>
    %82 = math.tanh %81 : vector<32x128xf32>
    %cst_30 = arith.constant 1.000000e+00 : f32
    %83 = vector.broadcast %cst_30 : f32 to vector<32x128xf32>
    %84 = arith.subf %83, %77 : vector<32x128xf32>
    %85 = arith.mulf %84, %82 : vector<32x128xf32>
    %86 = arith.mulf %77, %0 : vector<32x128xf32>
    %87 = arith.addf %85, %86 : vector<32x128xf32>
    %cst_31 = arith.constant 0.000000e+00 : f32
    %88 = vector.broadcast %cst_31 : f32 to vector<32x128xf32>
    %89 = arith.maximumf %87, %88 : vector<32x128xf32>
    %90 = vector.broadcast %5 : vector<1x128xf32> to vector<32x128xf32>
    %91 = arith.mulf %89, %90 : vector<32x128xf32>
    %92 = vector.broadcast %6 : vector<1x128xf32> to vector<32x128xf32>
    %93 = arith.addf %91, %92 : vector<32x128xf32>
    %c0_32 = arith.constant 0 : index
    %c0_33 = arith.constant 0 : index
    %94 = vector.load %arg8[%c0_32, %c0_33] : memref<32x128xf32, #tpu.memory_space<vmem>>, vector<32x128xf32>
    tpu.vector_store %arg8[%c0_32, %c0_33], %93 {strides = array<i32>} : memref<32x128xf32, #tpu.memory_space<vmem>>, vector<32x128xf32>,
    return
  }
  func.func @transform_0(%arg0: i32) -> (i32, i32) {
    %c0_i32 = arith.constant 0 : i32
    %c0_i32_0 = arith.constant 0 : i32
    return %arg0, %c0_i32 : i32, i32
  }
  func.func @transform_1(%arg0: i32) -> (i32, i32) {
    %c0_i32 = arith.constant 0 : i32
    %c0_i32_0 = arith.constant 0 : i32
    %c0_i32_1 = arith.constant 0 : i32
    return %c0_i32, %c0_i32_0 : i32, i32
  }
  func.func @transform_2(%arg0: i32) -> (i32, i32) {
    %c0_i32 = arith.constant 0 : i32
    %c0_i32_0 = arith.constant 0 : i32
    %c0_i32_1 = arith.constant 0 : i32
    return %c0_i32, %c0_i32_0 : i32, i32
  }
  func.func @transform_3(%arg0: i32) -> (i32, i32) {
    %c0_i32 = arith.constant 0 : i32
    %c0_i32_0 = arith.constant 0 : i32
    return %arg0, %c0_i32 : i32, i32
  }
  func.func @transform_4(%arg0: i32) -> (i32, i32) {
    %c0_i32 = arith.constant 0 : i32
    %c0_i32_0 = arith.constant 0 : i32
    %c0_i32_1 = arith.constant 0 : i32
    return %c0_i32, %c0_i32_0 : i32, i32
  }
  func.func @transform_5(%arg0: i32) -> (i32, i32) {
    %c0_i32 = arith.constant 0 : i32
    %c0_i32_0 = arith.constant 0 : i32
    %c0_i32_1 = arith.constant 0 : i32
    return %c0_i32, %c0_i32_0 : i32, i32
  }
  func.func @transform_6(%arg0: i32) -> (i32, i32) {
    %c0_i32 = arith.constant 0 : i32
    %c0_i32_0 = arith.constant 0 : i32
    %c0_i32_1 = arith.constant 0 : i32
    return %c0_i32, %c0_i32_0 : i32, i32
  }
  func.func @transform_7(%arg0: i32) -> (i32, i32) {
    %c0_i32 = arith.constant 0 : i32
    %c0_i32_0 = arith.constant 0 : i32
    return %arg0, %c0_i32 : i32, i32
  }
}

</mosaic_0001>

<llo_original>
// kernel: gnn_layer.1
$region0: #{gnn_layer.1}
  #allocation0 [shape = 'u32[]', space=smem, size = 0x4, offset = 0x4, fixed_abs, tag = 'smem constant byte address 0x4 - core index']
  #allocation1 [shape = 'u32[144,128]{1,0:T(1,128)}', space=vmem, size = 0x12000, scoped, tag = 'internal scratch']
  %s0 = inlined_call_operand.vmem [shape: f32[128,128], index: 0, kind: input, shape index: {}, may-alias: {0,1}]
  %s1 = inlined_call_operand.vmem [shape: f32[128,128], index: 1, kind: input, shape index: {}, may-alias: {0,1}]
  %s2 = inlined_call_operand.vmem [shape: f32[128,128], index: 2, kind: input, shape index: {}]
  %s3 = inlined_call_operand.vmem [shape: f32[128,128], index: 3, kind: input, shape index: {}]
  %s4 = inlined_call_operand.vmem [shape: f32[256,512], index: 4, kind: input, shape index: {}]
  %s5 = inlined_call_operand.vmem [shape: f32[128,128], index: 5, kind: input, shape index: {}]
  %s6 = inlined_call_operand.vmem [shape: f32[8,512], index: 6, kind: input, shape index: {}]
  %s7 = inlined_call_operand.vmem [shape: f32[128,128], index: 7, kind: output, shape index: {}]
  %s8 = sld [smem:[#allocation0]]
  $region61: #{gnn_layer.1} parent=0
    _
  %s10 = ssub.s32 1, %s8
  %s11 = scalar_select 0, %s10, %s8
  loop: start=0, step=1, limit=6
  $region2: #{gnn_layer.1} parent=0 // loop_pre_header
    _
  $region3: #{gnn_layer.1} parent=0 // loop_header
    %s13 = sphi 0, %s17
    %p14 = scmp.ge.s32.totalorder %s13, 6
    %s23 = sphi 0, %s25
    %s26 = sphi 0, %s23
    %s27 = sphi 0, %s26
    %s43 = sphi 0, %s27
    %s47 = sphi 0, %s47
    %s49 = sphi 0, %s47
    %s50 = sphi 0, %s49
    %s64 = sphi 0, %s50
    %s68 = sphi 0, %s68
    %s70 = sphi 0, %s68
    %s71 = sphi 0, %s70
    %s85 = sphi 0, %s71
    %s91 = sphi 0, %s93
    %s94 = sphi 0, %s91
    %s95 = sphi 0, %s94
    %s111 = sphi 0, %s95
    %s115 = sphi 0, %s115
    %s117 = sphi 0, %s115
    %s118 = sphi 0, %s117
    %s132 = sphi 0, %s118
    %s136 = sphi 0, %s136
    %s138 = sphi 0, %s136
    %s139 = sphi 0, %s138
    %s153 = sphi 0, %s139
    %s157 = sphi 0, %s157
    %s159 = sphi 0, %s157
    %s160 = sphi 0, %s159
    %s174 = sphi 0, %s160
    %s180 = sphi 0, %s182
    %s183 = sphi 0, %s180
    %s184 = sphi 0, %s183
    %s200 = sphi 0, %s184
  $region4: #{gnn_layer.1} parent=0 // loop_header_branch
    %16 = sbr.rel (%p14) target = $region8
  $region5: #{gnn_layer.1} parent=0 // loop_body
    %s18 = ssub.s32 %s13, 1
    %s19 = ssub.s32 %s13, 2
    %s20 = sadd.s32 %s13, 1
    %s21 = ssub.s32 %s13, %s20
    %p22 = scmp.eq.s32.totalorder %s21, 0
    %s24 = sadd.s32 %s23, 1
    %s25 = scalar_select %p22, %s23, %s24
    %p28 = pneg %p22
    %p29 = scmp.eq.s32.totalorder %s13, 3
    %p30 = por %p28, %p29
    %p31 = scmp.ne.s32.totalorder %s23, %s26
    %p32 = scmp.eq.s32.totalorder %s13, 0
    %p33 = por %p31, %p32
    %p34 = scmp.ne.s32.totalorder %s23, %s26
    %p35 = scmp.eq.s32.totalorder %s18, 3
    %p36 = por %p34, %p35
    %p37 = scmp.ne.s32.totalorder %s26, %s27
    %p38 = scmp.eq.s32.totalorder %s18, 0
    %p39 = por %p37, %p38
    %p40 = scmp.ne.s32.totalorder %s26, %s27
    %p41 = scmp.eq.s32.totalorder %s19, 3
    %p42 = por %p40, %p41
    %p44 = scmp.ne.s32.totalorder %s27, %s43
    %p45 = scmp.eq.s32.totalorder %s19, 0
    %p46 = por %p44, %p45
    %s48 = sadd.s32 %s47, 1
    %p51 = scmp.eq.s32.totalorder %s13, 3
    %p52 = scmp.ne.s32.totalorder %s47, %s49
    %p53 = scmp.eq.s32.totalorder %s13, 0
    %p54 = por %p52, %p53
    %p55 = scmp.ne.s32.totalorder %s47, %s49
    %p56 = scmp.eq.s32.totalorder %s18, 3
    %p57 = por %p55, %p56
    %p58 = scmp.ne.s32.totalorder %s49, %s50
    %p59 = scmp.eq.s32.totalorder %s18, 0
    %p60 = por %p58, %p59
    %p61 = scmp.ne.s32.totalorder %s49, %s50
    %p62 = scmp.eq.s32.totalorder %s19, 3
    %p63 = por %p61, %p62
    %p65 = scmp.ne.s32.totalorder %s50, %s64
    %p66 = scmp.eq.s32.totalorder %s19, 0
    %p67 = por %p65, %p66
    %s69 = sadd.s32 %s68, 1
    %p72 = scmp.eq.s32.totalorder %s13, 3
    %p73 = scmp.ne.s32.totalorder %s68, %s70
    %p74 = scmp.eq.s32.totalorder %s13, 0
    %p75 = por %p73, %p74
    %p76 = scmp.ne.s32.totalorder %s68, %s70
    %p77 = scmp.eq.s32.totalorder %s18, 3
    %p78 = por %p76, %p77
    %p79 = scmp.ne.s32.totalorder %s70, %s71
    %p80 = scmp.eq.s32.totalorder %s18, 0
    %p81 = por %p79, %p80
    %p82 = scmp.ne.s32.totalorder %s70, %s71
    %p83 = scmp.eq.s32.totalorder %s19, 3
    %p84 = por %p82, %p83
    %p86 = scmp.ne.s32.totalorder %s71, %s85
    %p87 = scmp.eq.s32.totalorder %s19, 0
    %p88 = por %p86, %p87
    %s89 = ssub.s32 %s13, %s20
    %p90 = scmp.eq.s32.totalorder %s89, 0
    %s92 = sadd.s32 %s91, 1
    %s93 = scalar_select %p90, %s91, %s92
    %p96 = pneg %p90
    %p97 = scmp.eq.s32.totalorder %s13, 3
    %p98 = por %p96, %p97
    %p99 = scmp.ne.s32.totalorder %s91, %s94
    %p100 = scmp.eq.s32.totalorder %s13, 0
    %p101 = por %p99, %p100
    %p102 = scmp.ne.s32.totalorder %s91, %s94
    %p103 = scmp.eq.s32.totalorder %s18, 3
    %p104 = por %p102, %p103
    %p105 = scmp.ne.s32.totalorder %s94, %s95
    %p106 = scmp.eq.s32.totalorder %s18, 0
    %p107 = por %p105, %p106
    %p108 = scmp.ne.s32.totalorder %s94, %s95
    %p109 = scmp.eq.s32.totalorder %s19, 3
    %p110 = por %p108, %p109
    %p112 = scmp.ne.s32.totalorder %s95, %s111
    %p113 = scmp.eq.s32.totalorder %s19, 0
    %p114 = por %p112, %p113
    %s116 = sadd.s32 %s115, 1
    %p119 = scmp.eq.s32.totalorder %s13, 3
    %p120 = scmp.ne.s32.totalorder %s115, %s117
    %p121 = scmp.eq.s32.totalorder %s13, 0
    %p122 = por %p120, %p121
    %p123 = scmp.ne.s32.totalorder %s115, %s117
    %p124 = scmp.eq.s32.totalorder %s18, 3
    %p125 = por %p123, %p124
    %p126 = scmp.ne.s32.totalorder %s117, %s118
    %p127 = scmp.eq.s32.totalorder %s18, 0
    %p128 = por %p126, %p127
    %p129 = scmp.ne.s32.totalorder %s117, %s118
    %p130 = scmp.eq.s32.totalorder %s19, 3
    %p131 = por %p129, %p130
    %p133 = scmp.ne.s32.totalorder %s118, %s132
    %p134 = scmp.eq.s32.totalorder %s19, 0
    %p135 = por %p133, %p134
    %s137 = sadd.s32 %s136, 1
    %p140 = scmp.eq.s32.totalorder %s13, 3
    %p141 = scmp.ne.s32.totalorder %s136, %s138
    %p142 = scmp.eq.s32.totalorder %s13, 0
    %p143 = por %p141, %p142
    %p144 = scmp.ne.s32.totalorder %s136, %s138
    %p145 = scmp.eq.s32.totalorder %s18, 3
    %p146 = por %p144, %p145
    %p147 = scmp.ne.s32.totalorder %s138, %s139
    %p148 = scmp.eq.s32.totalorder %s18, 0
    %p149 = por %p147, %p148
    %p150 = scmp.ne.s32.totalorder %s138, %s139
    %p151 = scmp.eq.s32.totalorder %s19, 3
    %p152 = por %p150, %p151
    %p154 = scmp.ne.s32.totalorder %s139, %s153
    %p155 = scmp.eq.s32.totalorder %s19, 0
    %p156 = por %p154, %p155
    %s158 = sadd.s32 %s157, 1
    %p161 = scmp.eq.s32.totalorder %s13, 3
    %p162 = scmp.ne.s32.totalorder %s157, %s159
    %p163 = scmp.eq.s32.totalorder %s13, 0
    %p164 = por %p162, %p163
    %p165 = scmp.ne.s32.totalorder %s157, %s159
    %p166 = scmp.eq.s32.totalorder %s18, 3
    %p167 = por %p165, %p166
    %p168 = scmp.ne.s32.totalorder %s159, %s160
    %p169 = scmp.eq.s32.totalorder %s18, 0
    %p170 = por %p168, %p169
    %p171 = scmp.ne.s32.totalorder %s159, %s160
    %p172 = scmp.eq.s32.totalorder %s19, 3
    %p173 = por %p171, %p172
    %p175 = scmp.ne.s32.totalorder %s160, %s174
    %p176 = scmp.eq.s32.totalorder %s19, 0
    %p177 = por %p175, %p176
    %s178 = ssub.s32 %s13, %s20
    %p179 = scmp.eq.s32.totalorder %s178, 0
    %s181 = sadd.s32 %s180, 1
    %s182 = scalar_select %p179, %s180, %s181
    %p185 = pneg %p179
    %p186 = scmp.eq.s32.totalorder %s13, 3
    %p187 = por %p185, %p186
    %p188 = scmp.ne.s32.totalorder %s180, %s183
    %p189 = scmp.eq.s32.totalorder %s13, 0
    %p190 = por %p188, %p189
    %p191 = scmp.ne.s32.totalorder %s180, %s183
    %p192 = scmp.eq.s32.totalorder %s18, 3
    %p193 = por %p191, %p192
    %p194 = scmp.ne.s32.totalorder %s183, %s184
    %p195 = scmp.eq.s32.totalorder %s18, 0
    %p196 = por %p194, %p195
    %p197 = scmp.ne.s32.totalorder %s183, %s184
    %p198 = scmp.eq.s32.totalorder %s19, 3
    %p199 = por %p197, %p198
    %p201 = scmp.ne.s32.totalorder %s184, %s200
    %p202 = scmp.eq.s32.totalorder %s19, 0
    %p203 = por %p201, %p202
    %p204 = scmp.le.s32.totalorder 1, %s13
    %p205 = scmp.lt.s32.totalorder %s13, 5
    %p206 = pnand %p204, %p205
    %p207 = pneg %p206
    // Predicated region
    $region9: #{gnn_layer.1} parent=5 // pred_check
      _
    $region10: #{gnn_layer.1} parent=5 // pred_check_branch
      %209 = sbr.rel (%p206) target = $region12
    $region11: #{gnn_layer.1} parent=5 // pred_region
      %s210 = ssub.s32 %s13, 1
      // Predicated region
      $region13: #{gnn_layer.1} parent=11 // pred_check
        %p211 = pneg %p60
      $region14: #{gnn_layer.1} parent=11 // pred_check_branch
        %213 = sbr.rel (%p211) target = $region16
      $region15: #{gnn_layer.1} parent=11 // pred_region
        _
      $region16: #{gnn_layer.1} parent=11 // pred_fallthru
        _
      // Predicated region
      $region17: #{gnn_layer.1} parent=11 // pred_check
        %p214 = pneg %p81
      $region18: #{gnn_layer.1} parent=11 // pred_check_branch
        %216 = sbr.rel (%p214) target = $region20
      $region19: #{gnn_layer.1} parent=11 // pred_region
        _
      $region20: #{gnn_layer.1} parent=11 // pred_fallthru
        _
      // Predicated region
      $region21: #{gnn_layer.1} parent=11 // pred_check
        %p217 = pneg %p128
      $region22: #{gnn_layer.1} parent=11 // pred_check_branch
        %219 = sbr.rel (%p217) target = $region24
      $region23: #{gnn_layer.1} parent=11 // pred_region
        _
      $region24: #{gnn_layer.1} parent=11 // pred_fallthru
        _
      // Predicated region
      $region25: #{gnn_layer.1} parent=11 // pred_check
        %p220 = pneg %p149
      $region26: #{gnn_layer.1} parent=11 // pred_check_branch
        %222 = sbr.rel (%p220) target = $region28
      $region27: #{gnn_layer.1} parent=11 // pred_region
        _
      $region28: #{gnn_layer.1} parent=11 // pred_fallthru
        _
      // Predicated region
      $region29: #{gnn_layer.1} parent=11 // pred_check
        %p223 = pneg %p170
      $region30: #{gnn_layer.1} parent=11 // pred_check_branch
        %225 = sbr.rel (%p223) target = $region32
      $region31: #{gnn_layer.1} parent=11 // pred_region
        _
      $region32: #{gnn_layer.1} parent=11 // pred_fallthru
        _
    $region12: #{gnn_layer.1} parent=5 // pred_fallthru
      _
    %p226 = scmp.lt.s32.totalorder %s13, 4
    // Predicated region
    $region33: #{gnn_layer.1} parent=5 // pred_check
      %p227 = pneg %p226
    $region34: #{gnn_layer.1} parent=5 // pred_check_branch
      %229 = sbr.rel (%p227) target = $region36
    $region35: #{gnn_layer.1} parent=5 // pred_region
      // Predicated region
      $region37: #{gnn_layer.1} parent=35 // pred_check
        %p230 = pneg %p33
      $region38: #{gnn_layer.1} parent=35 // pred_check_branch
        %232 = sbr.rel (%p230) target = $region40
      $region39: #{gnn_layer.1} parent=35 // pred_region
        %s233 = smul.u32 4, %s13
        %p234 = scmp.lt.s32.totalorder %s233, 15
        %s235 = scalar_select %p234, %s233, 15
        %s236 = smul.addr %s235, 8
        %s237 = scalar_lea.vmem %s0, %s236
        %s238 = smul.u32 4, %s13
      $region40: #{gnn_layer.1} parent=35 // pred_fallthru
        _
      // Predicated region
      $region41: #{gnn_layer.1} parent=35 // pred_check
        %p239 = pneg %p101
      $region42: #{gnn_layer.1} parent=35 // pred_check_branch
        %241 = sbr.rel (%p239) target = $region44
      $region43: #{gnn_layer.1} parent=35 // pred_region
        %s242 = smul.u32 4, %s13
        %p243 = scmp.lt.s32.totalorder %s242, 15
        %s244 = scalar_select %p243, %s242, 15
        %s245 = smul.addr %s244, 8
        %s246 = scalar_lea.vmem %s3, %s245
        %s247 = smul.u32 4, %s13
      $region44: #{gnn_layer.1} parent=35 // pred_fallthru
        _
    $region36: #{gnn_layer.1} parent=5 // pred_fallthru
      _
    %p248 = scmp.le.s32.totalorder 1, %s13
    %p249 = scmp.lt.s32.totalorder %s13, 5
    %p250 = pnand %p248, %p249
    %p251 = pneg %p250
    // Predicated region
    $region45: #{gnn_layer.1} parent=5 // pred_check
      _
    $region46: #{gnn_layer.1} parent=5 // pred_check_branch
      %253 = sbr.rel (%p250) target = $region48
    $region47: #{gnn_layer.1} parent=5 // pred_region
      %s254 = ssub.s32 %s13, 1
      %s255 = smul.u32 4, %s18
      %p256 = scmp.lt.s32.totalorder %s255, 15
      %s257 = scalar_select %p256, %s255, 15
      %s258 = smul.addr %s257, 8
      %s259 = scalar_lea.vmem %s0, %s258
      %p260 = pneg %p39
      %p261 = pneg %p36
      %p262 = pneg %p60
      %p263 = pneg %p57
      %p264 = pneg %p81
      %p265 = pneg %p78
      %s266 = smul.u32 4, %s18
      %p267 = scmp.lt.s32.totalorder %s266, 15
      %s268 = scalar_select %p267, %s266, 15
      %s269 = smul.addr %s268, 8
      %s270 = scalar_lea.vmem %s3, %s269
      %p271 = pneg %p107
      %p272 = pneg %p104
      %p273 = pneg %p128
      %p274 = pneg %p125
      %p275 = pneg %p149
      %p276 = pneg %p146
      %p277 = pneg %p170
      %p278 = pneg %p167
      %p279 = pneg %p196
      %p280 = pneg %p193
      %s281 = smul.u32 4, %s18
      %p282 = scmp.lt.s32.totalorder %s281, 15
      %s283 = scalar_select %p282, %s281, 15
      %s284 = smul.addr %s283, 8
      %s285 = scalar_lea.vmem %s7, %s284
      %s286 = smul.u32 4, %s18
      %p287 = scmp.lt.s32.totalorder %s286, 15
      %s288 = scalar_select %p287, %s286, 15
      %s289 = smul.addr %s288, 8
      %s290 = scalar_lea.vmem %s0, %s289
      %s291 = smul.u32 4, %s18
      %s292 = smul.u32 4, %s18
      %p293 = scmp.lt.s32.totalorder %s292, 15
      %s294 = scalar_select %p293, %s292, 15
      %s295 = smul.addr %s294, 8
      %s296 = scalar_lea.vmem %s3, %s295
      %s297 = smul.u32 4, %s18
      %s298 = smul.u32 4, %s18
      %p299 = scmp.lt.s32.totalorder %s298, 15
      %s300 = scalar_select %p299, %s298, 15
      %s301 = smul.addr %s300, 8
      %s302 = scalar_lea.vmem %s7, %s301
      %s303 = smul.u32 4, %s18
      %v304 = vld [vmem:[%s290] sm:$0xff]
      %v305 = vld [vmem:[%s290 + $0x8] sm:$0xff]
      %v306 = vld [vmem:[%s290 + $0x10] sm:$0xff]
      %v307 = vld [vmem:[%s290 + $0x18] sm:$0xff]
      %v308 = vld [vmem:[%s296] sm:$0xff]
      %v309 = vld [vmem:[%s296 + $0x8] sm:$0xff]
      %v310 = vld [vmem:[%s296 + $0x10] sm:$0xff]
      %v311 = vld [vmem:[%s296 + $0x18] sm:$0xff]
      %v312 = vld [vmem:[%s6] sm:$0xff]
      %v313 = vld [vmem:[%s6 + $0x8] sm:$0xff]
      %v314 = vld [vmem:[%s6 + $0x10] sm:$0xff]
      %v315 = vld [vmem:[%s6 + $0x18] sm:$0xff]
      %v316 = vlaneseq
      %v317 = vshrl.u32 %v316, 7
      %v318 = vsub.s32 0, %v317
      %v319 = vrot.slane %v312, %v318
      %v320 = vmul.f32 %v304, %v319
      %v321 = vmul.f32 %v305, %v319
      %v322 = vmul.f32 %v306, %v319
      %v323 = vmul.f32 %v307, %v319
      %324 = vadd.xlane.f32.xlu0 %v320
      %v325 = vpop.xlane.xlu0 %324
      %326 = vadd.xlane.f32.xlu0 %v321
      %v327 = vpop.xlane.xlu0 %326
      %328 = vadd.xlane.f32.xlu0 %v322
      %v329 = vpop.xlane.xlu0 %328
      %330 = vadd.xlane.f32.xlu0 %v323
      %v331 = vpop.xlane.xlu0 %330
      %v332 = vlaneseq
      %v333 = vshrl.u32 %v332, 7
      %v334 = vsub.s32 6, %v333
      %v335 = vrot.slane %v312, %v334
      %v336 = vadd.f32 %v325, %v335
      %v337 = vadd.f32 %v327, %v335
      %v338 = vadd.f32 %v329, %v335
      %v339 = vadd.f32 %v331, %v335
      %v340 = vld [vmem:[%s2] sm:$0xff]
      %v341 = vld [vmem:[%s2 + $0x8] sm:$0xff]
      %v342 = vld [vmem:[%s2 + $0x10] sm:$0xff]
      %v343 = vld [vmem:[%s2 + $0x18] sm:$0xff]
      %v344 = vld [vmem:[%s2 + $0x20] sm:$0xff]
      %v345 = vld [vmem:[%s2 + $0x28] sm:$0xff]
      %v346 = vld [vmem:[%s2 + $0x30] sm:$0xff]
      %v347 = vld [vmem:[%s2 + $0x38] sm:$0xff]
      %v348 = vld [vmem:[%s2 + $0x40] sm:$0xff]
      %v349 = vld [vmem:[%s2 + $0x48] sm:$0xff]
      %v350 = vld [vmem:[%s2 + $0x50] sm:$0xff]
      %v351 = vld [vmem:[%s2 + $0x58] sm:$0xff]
      %v352 = vld [vmem:[%s2 + $0x60] sm:$0xff]
      %v353 = vld [vmem:[%s2 + $0x68] sm:$0xff]
      %v354 = vld [vmem:[%s2 + $0x70] sm:$0xff]
      %v355 = vld [vmem:[%s2 + $0x78] sm:$0xff]
      %356 = vmatprep.subr.mxu0 0.0
      %357 = vmatpush1.msra.mxu0 %v340
      %358 = vmatprep.subr.mxu0 0.0
      %359 = vmatpush1.msra.mxu0 %v341
      %360 = vmatprep.subr.mxu0 0.0
      %361 = vmatpush1.msra.mxu0 %v342
      %362 = vmatprep.subr.mxu0 0.0
      %363 = vmatpush1.msra.mxu0 %v343
      %364 = vmatprep.subr.mxu0 0.0
      %365 = vmatpush1.msra.mxu0 %v344
      %366 = vmatprep.subr.mxu0 0.0
      %367 = vmatpush1.msra.mxu0 %v345
      %368 = vmatprep.subr.mxu0 0.0
      %369 = vmatpush1.msra.mxu0 %v346
      %370 = vmatprep.subr.mxu0 0.0
      %371 = vmatpush1.msra.mxu0 %v347
      %372 = vmatprep.subr.mxu0 0.0
      %373 = vmatpush1.msra.mxu0 %v348
      %374 = vmatprep.subr.mxu0 0.0
      %375 = vmatpush1.msra.mxu0 %v349
      %376 = vmatprep.subr.mxu0 0.0
      %377 = vmatpush1.msra.mxu0 %v350
      %378 = vmatprep.subr.mxu0 0.0
      %379 = vmatpush1.msra.mxu0 %v351
      %380 = vmatprep.subr.mxu0 0.0
      %381 = vmatpush1.msra.mxu0 %v352
      %382 = vmatprep.subr.mxu0 0.0
      %383 = vmatpush1.msra.mxu0 %v353
      %384 = vmatprep.subr.mxu0 0.0
      %385 = vmatpush1.msra.mxu0 %v354
      %386 = vmatprep.subr.mxu0 0.0
      %387 = vmatpush1.msra.mxu0 %v355
      %388 = vmatprep.subr.mxu0 0.0
      %389 = vmatpush1.msra.mxu0 0.0
      %390 = vmatprep.subr.mxu0 0.0
      %391 = vmatpush1.msra.mxu0 0.0
      %392 = vmatprep.subr.mxu0 0.0
      %393 = vmatpush1.msra.mxu0 0.0
      %394 = vmatprep.subr.mxu0 0.0
      %395 = vmatpush1.msra.mxu0 0.0
      %396 = vmatprep.subr.mxu0 0.0
      %397 = vmatpush1.msra.mxu0 0.0
      %398 = vmatprep.subr.mxu0 0.0
      %399 = vmatpush1.msra.mxu0 0.0
      %400 = vmatprep.subr.mxu0 0.0
      %401 = vmatpush1.msra.mxu0 0.0
      %402 = vmatprep.subr.mxu0 0.0
      %403 = vmatpush1.msra.mxu0 0.0
      %404 = vmatprep.subr.mxu0 0.0
      %405 = vmatpush1.msra.mxu0 0.0
      %406 = vmatprep.subr.mxu0 0.0
      %407 = vmatpush1.msra.mxu0 0.0
      %408 = vmatprep.subr.mxu0 0.0
      %409 = vmatpush1.msra.mxu0 0.0
      %410 = vmatprep.subr.mxu0 0.0
      %411 = vmatpush1.msra.mxu0 0.0
      %412 = vmatprep.subr.mxu0 0.0
      %413 = vmatpush1.msra.mxu0 0.0
      %414 = vmatprep.subr.mxu0 0.0
      %415 = vmatpush1.msra.mxu0 0.0
      %416 = vmatprep.subr.mxu0 0.0
      %417 = vmatpush1.msra.mxu0 0.0
      %418 = vmatprep.subr.mxu0 0.0
      %419 = vmatpush1.msra.mxu0 0.0
      %420 = vmatprep.mubr.f32.mxu0 0.0
      %421 = vmatmul.mubr.f32.gmra.mrb[0].mxu0 %v312
      %v422 = vpop.f32.mrb[0].mxu0
      %v423 = vadd.f32 0.0, %v422
      %v424 = vpop.f32.mrb[0].mxu0
      %425 = vdwg.mxu0
      %427 = vset.pattern.permute.xlu0 0
      %428 = vperm.xlu0 %427, %v336
      %v429 = vpop.permute.xlu0 %428
      %432 = vset.pattern.permute.xlu0 0
      %433 = vperm.xlu0 %432, %v337
      %v434 = vpop.permute.xlu0 %433
      %437 = vset.pattern.permute.xlu0 0
      %438 = vperm.xlu0 %437, %v338
      %v439 = vpop.permute.xlu0 %438
      %442 = vset.pattern.permute.xlu0 0
      %443 = vperm.xlu0 %442, %v339
      %v444 = vpop.permute.xlu0 %443
      %v446 = vlaneseq
      %v447 = vshrl.u32 %v446, 7
      %v448 = vsub.s32 1, %v447
      %v449 = vrot.slane %v423, %v448
      %v450 = vadd.f32 %v429, %v449
      %v451 = vadd.f32 %v434, %v449
      %v452 = vadd.f32 %v439, %v449
      %v453 = vadd.f32 %v444, %v449
      %vm454 = vcmp.ge.f32.partialorder %v450, 0.0
      %vm455 = vcmp.ge.f32.partialorder %v451, 0.0
      %vm456 = vcmp.ge.f32.partialorder %v452, 0.0
      %vm457 = vcmp.ge.f32.partialorder %v453, 0.0
      %v458 = vmul.f32 %v450, 0.01
      %v459 = vmul.f32 %v451, 0.01
      %v460 = vmul.f32 %v452, 0.01
      %v461 = vmul.f32 %v453, 0.01
      %v462 = vsel %vm454, %v450, %v458
      %v463 = vsel %vm455, %v451, %v459
      %v464 = vsel %vm456, %v452, %v460
      %v465 = vsel %vm457, %v453, %v461
      %vm466 = vcmp.gt.f32.partialorder %v308, 0.0
      %vm467 = vcmp.gt.f32.partialorder %v309, 0.0
      %vm468 = vcmp.gt.f32.partialorder %v310, 0.0
      %vm469 = vcmp.gt.f32.partialorder %v311, 0.0
      %v470 = vsel %vm466, %v462, -1e+30
      %v471 = vsel %vm467, %v463, -1e+30
      %v472 = vsel %vm468, %v464, -1e+30
      %v473 = vsel %vm469, %v465, -1e+30
      %474 = vmax.xlane.f32.xlu0 %v470
      %v475 = vpop.xlane.xlu0 %474
      %476 = vmax.xlane.f32.xlu0 %v471
      %v477 = vpop.xlane.xlu0 %476
      %478 = vmax.xlane.f32.xlu0 %v472
      %v479 = vpop.xlane.xlu0 %478
      %480 = vmax.xlane.f32.xlu0 %v473
      %v481 = vpop.xlane.xlu0 %480
      %v482 = vsub.f32 %v470, %v475
      %v483 = vsub.f32 %v471, %v477
      %v484 = vsub.f32 %v472, %v479
      %v485 = vsub.f32 %v473, %v481
      %v486 = vmul.f32 %v482, 1.442695
      %v487 = vpow.pop %v486
      %v488 = vmul.f32 %v483, 1.442695
      %v489 = vpow.pop %v488
      %v490 = vmul.f32 %v484, 1.442695
      %v491 = vpow.pop %v490
      %v492 = vmul.f32 %v485, 1.442695
      %v493 = vpow.pop %v492
      %v494 = vmul.f32 %v487, %v308
      %v495 = vmul.f32 %v489, %v309
      %v496 = vmul.f32 %v491, %v310
      %v497 = vmul.f32 %v493, %v311
      %498 = vadd.xlane.f32.xlu0 %v494
      %v499 = vpop.xlane.xlu0 %498
      %500 = vadd.xlane.f32.xlu0 %v495
      %v501 = vpop.xlane.xlu0 %500
      %502 = vadd.xlane.f32.xlu0 %v496
      %v503 = vpop.xlane.xlu0 %502
      %504 = vadd.xlane.f32.xlu0 %v497
      %v505 = vpop.xlane.xlu0 %504
      %v506 = vmax.f32 %v499, 1e-20
      %v507 = vmax.f32 %v501, 1e-20
      %v508 = vmax.f32 %v503, 1e-20
      %v509 = vmax.f32 %v505, 1e-20
      %v510 = vrcp.pop %v506
      %v511 = vmul.f32 %v494, %v510
      %v512 = vrcp.pop %v507
      %v513 = vmul.f32 %v495, %v512
      %v514 = vrcp.pop %v508
      %v515 = vmul.f32 %v496, %v514
      %v516 = vrcp.pop %v509
      %v517 = vmul.f32 %v497, %v516
      %518 = vadd.xlane.f32.xlu0 %v511
      %v519 = vpop.xlane.xlu0 %518
      %520 = vadd.xlane.f32.xlu0 %v513
      %v521 = vpop.xlane.xlu0 %520
      %522 = vadd.xlane.f32.xlu0 %v515
      %v523 = vpop.xlane.xlu0 %522
      %524 = vadd.xlane.f32.xlu0 %v517
      %v525 = vpop.xlane.xlu0 %524
      %v526 = vld [vmem:[%s1] sm:$0xff]
      %v527 = vld [vmem:[%s1 + $0x8] sm:$0xff]
      %v528 = vld [vmem:[%s1 + $0x10] sm:$0xff]
      %v529 = vld [vmem:[%s1 + $0x18] sm:$0xff]
      %v530 = vld [vmem:[%s1 + $0x20] sm:$0xff]
      %v531 = vld [vmem:[%s1 + $0x28] sm:$0xff]
      %v532 = vld [vmem:[%s1 + $0x30] sm:$0xff]
      %v533 = vld [vmem:[%s1 + $0x38] sm:$0xff]
      %v534 = vld [vmem:[%s1 + $0x40] sm:$0xff]
      %v535 = vld [vmem:[%s1 + $0x48] sm:$0xff]
      %v536 = vld [vmem:[%s1 + $0x50] sm:$0xff]
      %v537 = vld [vmem:[%s1 + $0x58] sm:$0xff]
      %v538 = vld [vmem:[%s1 + $0x60] sm:$0xff]
      %v539 = vld [vmem:[%s1 + $0x68] sm:$0xff]
      %v540 = vld [vmem:[%s1 + $0x70] sm:$0xff]
      %v541 = vld [vmem:[%s1 + $0x78] sm:$0xff]
      %542 = vmatprep.subr.mxu0 0.0
      %543 = vmatpush1.msra.mxu0 %v526
      %544 = vmatprep.subr.mxu0 0.0
      %545 = vmatpush1.msra.mxu0 %v527
      %546 = vmatprep.subr.mxu0 0.0
      %547 = vmatpush1.msra.mxu0 %v528
      %548 = vmatprep.subr.mxu0 0.0
      %549 = vmatpush1.msra.mxu0 %v529
      %550 = vmatprep.subr.mxu0 0.0
      %551 = vmatpush1.msra.mxu0 %v530
      %552 = vmatprep.subr.mxu0 0.0
      %553 = vmatpush1.msra.mxu0 %v531
      %554 = vmatprep.subr.mxu0 0.0
      %555 = vmatpush1.msra.mxu0 %v532
      %556 = vmatprep.subr.mxu0 0.0
      %557 = vmatpush1.msra.mxu0 %v533
      %558 = vmatprep.subr.mxu0 0.0
      %559 = vmatpush1.msra.mxu0 %v534
      %560 = vmatprep.subr.mxu0 0.0
      %561 = vmatpush1.msra.mxu0 %v535
      %562 = vmatprep.subr.mxu0 0.0
      %563 = vmatpush1.msra.mxu0 %v536
      %564 = vmatprep.subr.mxu0 0.0
      %565 = vmatpush1.msra.mxu0 %v537
      %566 = vmatprep.subr.mxu0 0.0
      %567 = vmatpush1.msra.mxu0 %v538
      %568 = vmatprep.subr.mxu0 0.0
      %569 = vmatpush1.msra.mxu0 %v539
      %570 = vmatprep.subr.mxu0 0.0
      %571 = vmatpush1.msra.mxu0 %v540
      %572 = vmatprep.subr.mxu0 0.0
      %573 = vmatpush1.msra.mxu0 %v541
      %574 = vmatprep.subr.mxu0 0.0
      %575 = vmatpush1.msra.mxu0 0.0
      %576 = vmatprep.subr.mxu0 0.0
      %577 = vmatpush1.msra.mxu0 0.0
      %578 = vmatprep.subr.mxu0 0.0
      %579 = vmatpush1.msra.mxu0 0.0
      %580 = vmatprep.subr.mxu0 0.0
      %581 = vmatpush1.msra.mxu0 0.0
      %582 = vmatprep.subr.mxu0 0.0
      %583 = vmatpush1.msra.mxu0 0.0
      %584 = vmatprep.subr.mxu0 0.0
      %585 = vmatpush1.msra.mxu0 0.0
      %586 = vmatprep.subr.mxu0 0.0
      %587 = vmatpush1.msra.mxu0 0.0
      %588 = vmatprep.subr.mxu0 0.0
      %589 = vmatpush1.msra.mxu0 0.0
      %590 = vmatprep.subr.mxu0 0.0
      %591 = vmatpush1.msra.mxu0 0.0
      %592 = vmatprep.subr.mxu0 0.0
      %593 = vmatpush1.msra.mxu0 0.0
      %594 = vmatprep.subr.mxu0 0.0
      %595 = vmatpush1.msra.mxu0 0.0
      %596 = vmatprep.subr.mxu0 0.0
      %597 = vmatpush1.msra.mxu0 0.0
      %598 = vmatprep.subr.mxu0 0.0
      %599 = vmatpush1.msra.mxu0 0.0
      %600 = vmatprep.subr.mxu0 0.0
      %601 = vmatpush1.msra.mxu0 0.0
      %602 = vmatprep.subr.mxu0 0.0
      %603 = vmatpush1.msra.mxu0 0.0
      %604 = vmatprep.subr.mxu0 0.0
      %605 = vmatpush1.msra.mxu0 0.0
      %606 = vmatprep.mubr.f32.mxu0 0.0
      %607 = vmatmul.mubr.f32.gmra.mrb[0].mxu0 %v511
      %v608 = vpop.f32.mrb[0].mxu0
      %v609 = vadd.f32 0.0, %v608
      %v610 = vpop.f32.mrb[0].mxu0
      %611 = vmatprep.mubr.f32.mxu0 0.0
      %612 = vmatmul.mubr.f32.gmra.mrb[0].mxu0 %v513
      %v613 = vpop.f32.mrb[0].mxu0
      %v614 = vadd.f32 0.0, %v613
      %v615 = vpop.f32.mrb[0].mxu0
      %616 = vmatprep.mubr.f32.mxu0 0.0
      %617 = vmatmul.mubr.f32.gmra.mrb[0].mxu0 %v515
      %v618 = vpop.f32.mrb[0].mxu0
      %v619 = vadd.f32 0.0, %v618
      %v620 = vpop.f32.mrb[0].mxu0
      %621 = vmatprep.mubr.f32.mxu0 0.0
      %622 = vmatmul.mubr.f32.gmra.mrb[0].mxu0 %v517
      %v623 = vpop.f32.mrb[0].mxu0
      %v624 = vadd.f32 0.0, %v623
      %v625 = vpop.f32.mrb[0].mxu0
      %626 = vdwg.mxu0
      %v627 = vld [vmem:[%s5] sm:$0xff]
      %v628 = vld [vmem:[%s5 + $0x8] sm:$0xff]
      %v629 = vld [vmem:[%s5 + $0x10] sm:$0xff]
      %v630 = vld [vmem:[%s5 + $0x18] sm:$0xff]
      %v631 = vld [vmem:[%s5 + $0x20] sm:$0xff]
      %v632 = vld [vmem:[%s5 + $0x28] sm:$0xff]
      %v633 = vld [vmem:[%s5 + $0x30] sm:$0xff]
      %v634 = vld [vmem:[%s5 + $0x38] sm:$0xff]
      %v635 = vld [vmem:[%s5 + $0x40] sm:$0xff]
      %v636 = vld [vmem:[%s5 + $0x48] sm:$0xff]
      %v637 = vld [vmem:[%s5 + $0x50] sm:$0xff]
      %v638 = vld [vmem:[%s5 + $0x58] sm:$0xff]
      %v639 = vld [vmem:[%s5 + $0x60] sm:$0xff]
      %v640 = vld [vmem:[%s5 + $0x68] sm:$0xff]
      %v641 = vld [vmem:[%s5 + $0x70] sm:$0xff]
      %v642 = vld [vmem:[%s5 + $0x78] sm:$0xff]
      %v643 = vlaneseq
      %v644 = vshrl.u32 %v643, 7
      %v645 = vsub.s32 2, %v644
      %v646 = vrot.slane %v312, %v645
      %v647 = vmul.f32 %v519, %v646
      %v648 = vmul.f32 %v521, %v646
      %v649 = vmul.f32 %v523, %v646
      %v650 = vmul.f32 %v525, %v646
      %651 = vmatprep.subr.mxu0 0.0
      %652 = vmatpush1.msra.mxu0 %v627
      %653 = vmatprep.subr.mxu0 0.0
      %654 = vmatpush1.msra.mxu0 %v628
      %655 = vmatprep.subr.mxu0 0.0
      %656 = vmatpush1.msra.mxu0 %v629
      %657 = vmatprep.subr.mxu0 0.0
      %658 = vmatpush1.msra.mxu0 %v630
      %659 = vmatprep.subr.mxu0 0.0
      %660 = vmatpush1.msra.mxu0 %v631
      %661 = vmatprep.subr.mxu0 0.0
      %662 = vmatpush1.msra.mxu0 %v632
      %663 = vmatprep.subr.mxu0 0.0
      %664 = vmatpush1.msra.mxu0 %v633
      %665 = vmatprep.subr.mxu0 0.0
      %666 = vmatpush1.msra.mxu0 %v634
      %667 = vmatprep.subr.mxu0 0.0
      %668 = vmatpush1.msra.mxu0 %v635
      %669 = vmatprep.subr.mxu0 0.0
      %670 = vmatpush1.msra.mxu0 %v636
      %671 = vmatprep.subr.mxu0 0.0
      %672 = vmatpush1.msra.mxu0 %v637
      %673 = vmatprep.subr.mxu0 0.0
      %674 = vmatpush1.msra.mxu0 %v638
      %675 = vmatprep.subr.mxu0 0.0
      %676 = vmatpush1.msra.mxu0 %v639
      %677 = vmatprep.subr.mxu0 0.0
      %678 = vmatpush1.msra.mxu0 %v640
      %679 = vmatprep.subr.mxu0 0.0
      %680 = vmatpush1.msra.mxu0 %v641
      %681 = vmatprep.subr.mxu0 0.0
      %682 = vmatpush1.msra.mxu0 %v642
      %683 = vmatprep.subr.mxu0 0.0
      %684 = vmatpush1.msra.mxu0 0.0
      %685 = vmatprep.subr.mxu0 0.0
      %686 = vmatpush1.msra.mxu0 0.0
      %687 = vmatprep.subr.mxu0 0.0
      %688 = vmatpush1.msra.mxu0 0.0
      %689 = vmatprep.subr.mxu0 0.0
      %690 = vmatpush1.msra.mxu0 0.0
      %691 = vmatprep.subr.mxu0 0.0
      %692 = vmatpush1.msra.mxu0 0.0
      %693 = vmatprep.subr.mxu0 0.0
      %694 = vmatpush1.msra.mxu0 0.0
      %695 = vmatprep.subr.mxu0 0.0
      %696 = vmatpush1.msra.mxu0 0.0
      %697 = vmatprep.subr.mxu0 0.0
      %698 = vmatpush1.msra.mxu0 0.0
      %699 = vmatprep.subr.mxu0 0.0
      %700 = vmatpush1.msra.mxu0 0.0
      %701 = vmatprep.subr.mxu0 0.0
      %702 = vmatpush1.msra.mxu0 0.0
      %703 = vmatprep.subr.mxu0 0.0
      %704 = vmatpush1.msra.mxu0 0.0
      %705 = vmatprep.subr.mxu0 0.0
      %706 = vmatpush1.msra.mxu0 0.0
      %707 = vmatprep.subr.mxu0 0.0
      %708 = vmatpush1.msra.mxu0 0.0
      %709 = vmatprep.subr.mxu0 0.0
      %710 = vmatpush1.msra.mxu0 0.0
      %711 = vmatprep.subr.mxu0 0.0
      %712 = vmatpush1.msra.mxu0 0.0
      %713 = vmatprep.subr.mxu0 0.0
      %714 = vmatpush1.msra.mxu0 0.0
      %715 = vmatprep.mubr.f32.mxu0 0.0
      %716 = vmatmul.mubr.f32.gmra.mrb[0].mxu0 %v609
      %v717 = vpop.f32.mrb[0].mxu0
      %v718 = vadd.f32 %v647, %v717
      %v719 = vpop.f32.mrb[0].mxu0
      %720 = vmatprep.mubr.f32.mxu0 0.0
      %721 = vmatmul.mubr.f32.gmra.mrb[0].mxu0 %v614
      %v722 = vpop.f32.mrb[0].mxu0
      %v723 = vadd.f32 %v648, %v722
      %v724 = vpop.f32.mrb[0].mxu0
      %725 = vmatprep.mubr.f32.mxu0 0.0
      %726 = vmatmul.mubr.f32.gmra.mrb[0].mxu0 %v619
      %v727 = vpop.f32.mrb[0].mxu0
      %v728 = vadd.f32 %v649, %v727
      %v729 = vpop.f32.mrb[0].mxu0
      %730 = vmatprep.mubr.f32.mxu0 0.0
      %731 = vmatmul.mubr.f32.gmra.mrb[0].mxu0 %v624
      %v732 = vpop.f32.mrb[0].mxu0
      %v733 = vadd.f32 %v650, %v732
      %v734 = vpop.f32.mrb[0].mxu0
      %735 = vdwg.mxu0
      %vm736 = vcmp.gt.f32.partialorder %v718, 0.0
      %vm737 = vcmp.gt.f32.partialorder %v723, 0.0
      %vm738 = vcmp.gt.f32.partialorder %v728, 0.0
      %vm739 = vcmp.gt.f32.partialorder %v733, 0.0
      %v740 = vmin.f32 %v718, 0.0
      %v741 = vmin.f32 %v723, 0.0
      %v742 = vmin.f32 %v728, 0.0
      %v743 = vmin.f32 %v733, 0.0
      %v744 = vmul.f32 %v740, 1.442695
      %v745 = vpow.pop %v744
      %v746 = vmul.f32 %v741, 1.442695
      %v747 = vpow.pop %v746
      %v748 = vmul.f32 %v742, 1.442695
      %v749 = vpow.pop %v748
      %v750 = vmul.f32 %v743, 1.442695
      %v751 = vpow.pop %v750
      %v752 = vsub.f32 %v745, 1.0
      %v753 = vsub.f32 %v747, 1.0
      %v754 = vsub.f32 %v749, 1.0
      %v755 = vsub.f32 %v751, 1.0
      %v756 = vsel %vm736, %v718, %v752
      %v757 = vsel %vm737, %v723, %v753
      %v758 = vsel %vm738, %v728, %v754
      %v759 = vsel %vm739, %v733, %v755
      %v760 = vld [vmem:[%s4] sm:$0xff]
      %v761 = vld [vmem:[%s4 + $0x8] sm:$0xff]
      %v762 = vld [vmem:[%s4 + $0x10] sm:$0xff]
      %v763 = vld [vmem:[%s4 + $0x18] sm:$0xff]
      %v764 = vld [vmem:[%s4 + $0x20] sm:$0xff]
      %v765 = vld [vmem:[%s4 + $0x28] sm:$0xff]
      %v766 = vld [vmem:[%s4 + $0x30] sm:$0xff]
      %v767 = vld [vmem:[%s4 + $0x38] sm:$0xff]
      %v768 = vld [vmem:[%s4 + $0x40] sm:$0xff]
      %v769 = vld [vmem:[%s4 + $0x48] sm:$0xff]
      %v770 = vld [vmem:[%s4 + $0x50] sm:$0xff]
      %v771 = vld [vmem:[%s4 + $0x58] sm:$0xff]
      %v772 = vld [vmem:[%s4 + $0x60] sm:$0xff]
      %v773 = vld [vmem:[%s4 + $0x68] sm:$0xff]
      %v774 = vld [vmem:[%s4 + $0x70] sm:$0xff]
      %v775 = vld [vmem:[%s4 + $0x78] sm:$0xff]
      %v776 = vld [vmem:[%s4 + $0x80] sm:$0xff]
      %v777 = vld [vmem:[%s4 + $0x88] sm:$0xff]
      %v778 = vld [vmem:[%s4 + $0x90] sm:$0xff]
      %v779 = vld [vmem:[%s4 + $0x98] sm:$0xff]
      %v780 = vld [vmem:[%s4 + $0xa0] sm:$0xff]
      %v781 = vld [vmem:[%s4 + $0xa8] sm:$0xff]
      %v782 = vld [vmem:[%s4 + $0xb0] sm:$0xff]
      %v783 = vld [vmem:[%s4 + $0xb8] sm:$0xff]
      %v784 = vld [vmem:[%s4 + $0xc0] sm:$0xff]
      %v785 = vld [vmem:[%s4 + $0xc8] sm:$0xff]
      %v786 = vld [vmem:[%s4 + $0xd0] sm:$0xff]
      %v787 = vld [vmem:[%s4 + $0xd8] sm:$0xff]
      %v788 = vld [vmem:[%s4 + $0xe0] sm:$0xff]
      %v789 = vld [vmem:[%s4 + $0xe8] sm:$0xff]
      %v790 = vld [vmem:[%s4 + $0xf0] sm:$0xff]
      %v791 = vld [vmem:[%s4 + $0xf8] sm:$0xff]
      %v792 = vld [vmem:[%s4 + $0x100] sm:$0xff]
      %v793 = vld [vmem:[%s4 + $0x108] sm:$0xff]
      %v794 = vld [vmem:[%s4 + $0x110] sm:$0xff]
      %v795 = vld [vmem:[%s4 + $0x118] sm:$0xff]
      %v796 = vld [vmem:[%s4 + $0x120] sm:$0xff]
      %v797 = vld [vmem:[%s4 + $0x128] sm:$0xff]
      %v798 = vld [vmem:[%s4 + $0x130] sm:$0xff]
      %v799 = vld [vmem:[%s4 + $0x138] sm:$0xff]
      %v800 = vld [vmem:[%s4 + $0x140] sm:$0xff]
      %v801 = vld [vmem:[%s4 + $0x148] sm:$0xff]
      %v802 = vld [vmem:[%s4 + $0x150] sm:$0xff]
      %v803 = vld [vmem:[%s4 + $0x158] sm:$0xff]
      %v804 = vld [vmem:[%s4 + $0x160] sm:$0xff]
      %v805 = vld [vmem:[%s4 + $0x168] sm:$0xff]
      %v806 = vld [vmem:[%s4 + $0x170] sm:$0xff]
      %v807 = vld [vmem:[%s4 + $0x178] sm:$0xff]
      %v808 = vld [vmem:[%s4 + $0x180] sm:$0xff]
      %v809 = vld [vmem:[%s4 + $0x188] sm:$0xff]
      %v810 = vld [vmem:[%s4 + $0x190] sm:$0xff]
      %v811 = vld [vmem:[%s4 + $0x198] sm:$0xff]
      %v812 = vld [vmem:[%s4 + $0x1a0] sm:$0xff]
      %v813 = vld [vmem:[%s4 + $0x1a8] sm:$0xff]
      %v814 = vld [vmem:[%s4 + $0x1b0] sm:$0xff]
      %v815 = vld [vmem:[%s4 + $0x1b8] sm:$0xff]
      %v816 = vld [vmem:[%s4 + $0x1c0] sm:$0xff]
      %v817 = vld [vmem:[%s4 + $0x1c8] sm:$0xff]
      %v818 = vld [vmem:[%s4 + $0x1d0] sm:$0xff]
      %v819 = vld [vmem:[%s4 + $0x1d8] sm:$0xff]
      %v820 = vld [vmem:[%s4 + $0x1e0] sm:$0xff]
      %v821 = vld [vmem:[%s4 + $0x1e8] sm:$0xff]
      %v822 = vld [vmem:[%s4 + $0x1f0] sm:$0xff]
      %v823 = vld [vmem:[%s4 + $0x1f8] sm:$0xff]
      %v824 = vld [vmem:[%s4 + $0x200] sm:$0xff]
      %v825 = vld [vmem:[%s4 + $0x208] sm:$0xff]
      %v826 = vld [vmem:[%s4 + $0x210] sm:$0xff]
      %v827 = vld [vmem:[%s4 + $0x218] sm:$0xff]
      %v828 = vld [vmem:[%s4 + $0x220] sm:$0xff]
      %v829 = vld [vmem:[%s4 + $0x228] sm:$0xff]
      %v830 = vld [vmem:[%s4 + $0x230] sm:$0xff]
      %v831 = vld [vmem:[%s4 + $0x238] sm:$0xff]
      %v832 = vld [vmem:[%s4 + $0x240] sm:$0xff]
      %v833 = vld [vmem:[%s4 + $0x248] sm:$0xff]
      %v834 = vld [vmem:[%s4 + $0x250] sm:$0xff]
      %v835 = vld [vmem:[%s4 + $0x258] sm:$0xff]
      %v836 = vld [vmem:[%s4 + $0x260] sm:$0xff]
      %v837 = vld [vmem:[%s4 + $0x268] sm:$0xff]
      %v838 = vld [vmem:[%s4 + $0x270] sm:$0xff]
      %v839 = vld [vmem:[%s4 + $0x278] sm:$0xff]
      %v840 = vld [vmem:[%s4 + $0x280] sm:$0xff]
      %v841 = vld [vmem:[%s4 + $0x288] sm:$0xff]
      %v842 = vld [vmem:[%s4 + $0x290] sm:$0xff]
      %v843 = vld [vmem:[%s4 + $0x298] sm:$0xff]
      %v844 = vld [vmem:[%s4 + $0x2a0] sm:$0xff]
      %v845 = vld [vmem:[%s4 + $0x2a8] sm:$0xff]
      %v846 = vld [vmem:[%s4 + $0x2b0] sm:$0xff]
      %v847 = vld [vmem:[%s4 + $0x2b8] sm:$0xff]
      %v848 = vld [vmem:[%s4 + $0x2c0] sm:$0xff]
      %v849 = vld [vmem:[%s4 + $0x2c8] sm:$0xff]
      %v850 = vld [vmem:[%s4 + $0x2d0] sm:$0xff]
      %v851 = vld [vmem:[%s4 + $0x2d8] sm:$0xff]
      %v852 = vld [vmem:[%s4 + $0x2e0] sm:$0xff]
      %v853 = vld [vmem:[%s4 + $0x2e8] sm:$0xff]
      %v854 = vld [vmem:[%s4 + $0x2f0] sm:$0xff]
      %v855 = vld [vmem:[%s4 + $0x2f8] sm:$0xff]
      %v856 = vld [vmem:[%s4 + $0x300] sm:$0xff]
      %v857 = vld [vmem:[%s4 + $0x308] sm:$0xff]
      %v858 = vld [vmem:[%s4 + $0x310] sm:$0xff]
      %v859 = vld [vmem:[%s4 + $0x318] sm:$0xff]
      %v860 = vld [vmem:[%s4 + $0x320] sm:$0xff]
      %v861 = vld [vmem:[%s4 + $0x328] sm:$0xff]
      %v862 = vld [vmem:[%s4 + $0x330] sm:$0xff]
      %v863 = vld [vmem:[%s4 + $0x338] sm:$0xff]
      %v864 = vld [vmem:[%s4 + $0x340] sm:$0xff]
      %v865 = vld [vmem:[%s4 + $0x348] sm:$0xff]
      %v866 = vld [vmem:[%s4 + $0x350] sm:$0xff]
      %v867 = vld [vmem:[%s4 + $0x358] sm:$0xff]
      %v868 = vld [vmem:[%s4 + $0x360] sm:$0xff]
      %v869 = vld [vmem:[%s4 + $0x368] sm:$0xff]
      %v870 = vld [vmem:[%s4 + $0x370] sm:$0xff]
      %v871 = vld [vmem:[%s4 + $0x378] sm:$0xff]
      %v872 = vld [vmem:[%s4 + $0x380] sm:$0xff]
      %v873 = vld [vmem:[%s4 + $0x388] sm:$0xff]
      %v874 = vld [vmem:[%s4 + $0x390] sm:$0xff]
      %v875 = vld [vmem:[%s4 + $0x398] sm:$0xff]
      %v876 = vld [vmem:[%s4 + $0x3a0] sm:$0xff]
      %v877 = vld [vmem:[%s4 + $0x3a8] sm:$0xff]
      %v878 = vld [vmem:[%s4 + $0x3b0] sm:$0xff]
      %v879 = vld [vmem:[%s4 + $0x3b8] sm:$0xff]
      %v880 = vld [vmem:[%s4 + $0x3c0] sm:$0xff]
      %v881 = vld [vmem:[%s4 + $0x3c8] sm:$0xff]
      %v882 = vld [vmem:[%s4 + $0x3d0] sm:$0xff]
      %v883 = vld [vmem:[%s4 + $0x3d8] sm:$0xff]
      %v884 = vld [vmem:[%s4 + $0x3e0] sm:$0xff]
      %v885 = vld [vmem:[%s4 + $0x3e8] sm:$0xff]
      %v886 = vld [vmem:[%s4 + $0x3f0] sm:$0xff]
      %v887 = vld [vmem:[%s4 + $0x3f8] sm:$0xff]
      %v888 = vlaneseq
      %v889 = vshrl.u32 %v888, 7
      %v890 = vsub.s32 5, %v889
      %v891 = vrot.slane %v312, %v890
      %v892 = vlaneseq
      %v893 = vshrl.u32 %v892, 7
      %v894 = vsub.s32 5, %v893
      %v895 = vrot.slane %v313, %v894
      %v896 = vlaneseq
      %v897 = vshrl.u32 %v896, 7
      %v898 = vsub.s32 5, %v897
      %v899 = vrot.slane %v314, %v898
      %v900 = vlaneseq
      %v901 = vshrl.u32 %v900, 7
      %v902 = vsub.s32 5, %v901
      %v903 = vrot.slane %v315, %v902
      %904 = vmatprep.subr.mxu0 %v761
      %905 = vmatpush1.msra.mxu0 %v760
      %906 = vmatprep.subr.mxu0 %v765
      %907 = vmatpush1.msra.mxu0 %v764
      %908 = vmatprep.subr.mxu0 %v769
      %909 = vmatpush1.msra.mxu0 %v768
      %910 = vmatprep.subr.mxu0 %v773
      %911 = vmatpush1.msra.mxu0 %v772
      %912 = vmatprep.subr.mxu0 %v777
      %913 = vmatpush1.msra.mxu0 %v776
      %914 = vmatprep.subr.mxu0 %v781
      %915 = vmatpush1.msra.mxu0 %v780
      %916 = vmatprep.subr.mxu0 %v785
      %917 = vmatpush1.msra.mxu0 %v784
      %918 = vmatprep.subr.mxu0 %v789
      %919 = vmatpush1.msra.mxu0 %v788
      %920 = vmatprep.subr.mxu0 %v793
      %921 = vmatpush1.msra.mxu0 %v792
      %922 = vmatprep.subr.mxu0 %v797
      %923 = vmatpush1.msra.mxu0 %v796
      %924 = vmatprep.subr.mxu0 %v801
      %925 = vmatpush1.msra.mxu0 %v800
      %926 = vmatprep.subr.mxu0 %v805
      %927 = vmatpush1.msra.mxu0 %v804
      %928 = vmatprep.subr.mxu0 %v809
      %929 = vmatpush1.msra.mxu0 %v808
      %930 = vmatprep.subr.mxu0 %v813
      %931 = vmatpush1.msra.mxu0 %v812
      %932 = vmatprep.subr.mxu0 %v817
      %933 = vmatpush1.msra.mxu0 %v816
      %934 = vmatprep.subr.mxu0 %v821
      %935 = vmatpush1.msra.mxu0 %v820
      %936 = vmatprep.subr.mxu0 %v825
      %937 = vmatpush1.msra.mxu0 %v824
      %938 = vmatprep.subr.mxu0 %v829
      %939 = vmatpush1.msra.mxu0 %v828
      %940 = vmatprep.subr.mxu0 %v833
      %941 = vmatpush1.msra.mxu0 %v832
      %942 = vmatprep.subr.mxu0 %v837
      %943 = vmatpush1.msra.mxu0 %v836
      %944 = vmatprep.subr.mxu0 %v841
      %945 = vmatpush1.msra.mxu0 %v840
      %946 = vmatprep.subr.mxu0 %v845
      %947 = vmatpush1.msra.mxu0 %v844
      %948 = vmatprep.subr.mxu0 %v849
      %949 = vmatpush1.msra.mxu0 %v848
      %950 = vmatprep.subr.mxu0 %v853
      %951 = vmatpush1.msra.mxu0 %v852
      %952 = vmatprep.subr.mxu0 %v857
      %953 = vmatpush1.msra.mxu0 %v856
      %954 = vmatprep.subr.mxu0 %v861
      %955 = vmatpush1.msra.mxu0 %v860
      %956 = vmatprep.subr.mxu0 %v865
      %957 = vmatpush1.msra.mxu0 %v864
      %958 = vmatprep.subr.mxu0 %v869
      %959 = vmatpush1.msra.mxu0 %v868
      %960 = vmatprep.subr.mxu0 %v873
      %961 = vmatpush1.msra.mxu0 %v872
      %962 = vmatprep.subr.mxu0 %v877
      %963 = vmatpush1.msra.mxu0 %v876
      %964 = vmatprep.subr.mxu0 %v881
      %965 = vmatpush1.msra.mxu0 %v880
      %966 = vmatprep.subr.mxu0 %v885
      %967 = vmatpush1.msra.mxu0 %v884
      %968 = vmatprep.mubr.f32.mxu0 %v304
      %969 = vmatmul.mubr.f32.gmra.mrb[0].mxu0 %v756
      %v970 = vpop.f32.mrb[0].mxu0
      %v971 = vadd.f32 %v891, %v970
      %v972 = vpop.f32.mrb[0].mxu0
      %v973 = vadd.f32 %v895, %v972
      %974 = vmatprep.mubr.f32.mxu0 %v305
      %975 = vmatmul.mubr.f32.gmra.mrb[0].mxu0 %v757
      %v976 = vpop.f32.mrb[0].mxu0
      %v977 = vadd.f32 %v891, %v976
      %v978 = vpop.f32.mrb[0].mxu0
      %v979 = vadd.f32 %v895, %v978
      %980 = vmatprep.mubr.f32.mxu0 %v306
      %981 = vmatmul.mubr.f32.gmra.mrb[0].mxu0 %v758
      %v982 = vpop.f32.mrb[0].mxu0
      %v983 = vadd.f32 %v891, %v982
      %v984 = vpop.f32.mrb[0].mxu0
      %v985 = vadd.f32 %v895, %v984
      %986 = vmatprep.mubr.f32.mxu0 %v307
      %987 = vmatmul.mubr.f32.gmra.mrb[0].mxu0 %v759
      %v988 = vpop.f32.mrb[0].mxu0
      %v989 = vadd.f32 %v891, %v988
      %v990 = vpop.f32.mrb[0].mxu0
      %v991 = vadd.f32 %v895, %v990
      %992 = vdwg.mxu0
      %993 = vmatprep.subr.mxu0 %v763
      %994 = vmatpush1.msra.mxu0 %v762
      %995 = vmatprep.subr.mxu0 %v767
      %996 = vmatpush1.msra.mxu0 %v766
      %997 = vmatprep.subr.mxu0 %v771
      %998 = vmatpush1.msra.mxu0 %v770
      %999 = vmatprep.subr.mxu0 %v775
      %1000 = vmatpush1.msra.mxu0 %v774
      %1001 = vmatprep.subr.mxu0 %v779
      %1002 = vmatpush1.msra.mxu0 %v778
      %1003 = vmatprep.subr.mxu0 %v783
      %1004 = vmatpush1.msra.mxu0 %v782
      %1005 = vmatprep.subr.mxu0 %v787
      %1006 = vmatpush1.msra.mxu0 %v786
      %1007 = vmatprep.subr.mxu0 %v791
      %1008 = vmatpush1.msra.mxu0 %v790
      %1009 = vmatprep.subr.mxu0 %v795
      %1010 = vmatpush1.msra.mxu0 %v794
      %1011 = vmatprep.subr.mxu0 %v799
      %1012 = vmatpush1.msra.mxu0 %v798
      %1013 = vmatprep.subr.mxu0 %v803
      %1014 = vmatpush1.msra.mxu0 %v802
      %1015 = vmatprep.subr.mxu0 %v807
      %1016 = vmatpush1.msra.mxu0 %v806
      %1017 = vmatprep.subr.mxu0 %v811
      %1018 = vmatpush1.msra.mxu0 %v810
      %1019 = vmatprep.subr.mxu0 %v815
      %1020 = vmatpush1.msra.mxu0 %v814
      %1021 = vmatprep.subr.mxu0 %v819
      %1022 = vmatpush1.msra.mxu0 %v818
      %1023 = vmatprep.subr.mxu0 %v823
      %1024 = vmatpush1.msra.mxu0 %v822
      %1025 = vmatprep.subr.mxu0 %v827
      %1026 = vmatpush1.msra.mxu0 %v826
      %1027 = vmatprep.subr.mxu0 %v831
      %1028 = vmatpush1.msra.mxu0 %v830
      %1029 = vmatprep.subr.mxu0 %v835
      %1030 = vmatpush1.msra.mxu0 %v834
      %1031 = vmatprep.subr.mxu0 %v839
      %1032 = vmatpush1.msra.mxu0 %v838
      %1033 = vmatprep.subr.mxu0 %v843
      %1034 = vmatpush1.msra.mxu0 %v842
      %1035 = vmatprep.subr.mxu0 %v847
      %1036 = vmatpush1.msra.mxu0 %v846
      %1037 = vmatprep.subr.mxu0 %v851
      %1038 = vmatpush1.msra.mxu0 %v850
      %1039 = vmatprep.subr.mxu0 %v855
      %1040 = vmatpush1.msra.mxu0 %v854
      %1041 = vmatprep.subr.mxu0 %v859
      %1042 = vmatpush1.msra.mxu0 %v858
      %1043 = vmatprep.subr.mxu0 %v863
      %1044 = vmatpush1.msra.mxu0 %v862
      %1045 = vmatprep.subr.mxu0 %v867
      %1046 = vmatpush1.msra.mxu0 %v866
      %1047 = vmatprep.subr.mxu0 %v871
      %1048 = vmatpush1.msra.mxu0 %v870
      %1049 = vmatprep.subr.mxu0 %v875
      %1050 = vmatpush1.msra.mxu0 %v874
      %1051 = vmatprep.subr.mxu0 %v879
      %1052 = vmatpush1.msra.mxu0 %v878
      %1053 = vmatprep.subr.mxu0 %v883
      %1054 = vmatpush1.msra.mxu0 %v882
      %1055 = vmatprep.subr.mxu0 %v887
      %1056 = vmatpush1.msra.mxu0 %v886
      %1057 = vmatprep.mubr.f32.mxu0 %v304
      %1058 = vmatmul.mubr.f32.gmra.mrb[0].mxu0 %v756
      %v1059 = vpop.f32.mrb[0].mxu0
      %v1060 = vadd.f32 %v899, %v1059
      %v1061 = vpop.f32.mrb[0].mxu0
      %v1062 = vadd.f32 %v903, %v1061
      %1063 = vmatprep.mubr.f32.mxu0 %v305
      %1064 = vmatmul.mubr.f32.gmra.mrb[0].mxu0 %v757
      %v1065 = vpop.f32.mrb[0].mxu0
      %v1066 = vadd.f32 %v899, %v1065
      %v1067 = vpop.f32.mrb[0].mxu0
      %v1068 = vadd.f32 %v903, %v1067
      %1069 = vmatprep.mubr.f32.mxu0 %v306
      %1070 = vmatmul.mubr.f32.gmra.mrb[0].mxu0 %v758
      %v1071 = vpop.f32.mrb[0].mxu0
      %v1072 = vadd.f32 %v899, %v1071
      %v1073 = vpop.f32.mrb[0].mxu0
      %v1074 = vadd.f32 %v903, %v1073
      %1075 = vmatprep.mubr.f32.mxu0 %v307
      %1076 = vmatmul.mubr.f32.gmra.mrb[0].mxu0 %v759
      %v1077 = vpop.f32.mrb[0].mxu0
      %v1078 = vadd.f32 %v899, %v1077
      %v1079 = vpop.f32.mrb[0].mxu0
      %v1080 = vadd.f32 %v903, %v1079
      %1081 = vdwg.mxu0
      %v1082 = vxor.u32 %v971, 2147483648
      %v1083 = vxor.u32 %v977, 2147483648
      %v1084 = vxor.u32 %v983, 2147483648
      %v1085 = vxor.u32 %v989, 2147483648
      %v1086 = vmul.f32 %v1082, 1.442695
      %v1087 = vpow.pop %v1086
      %v1088 = vmul.f32 %v1083, 1.442695
      %v1089 = vpow.pop %v1088
      %v1090 = vmul.f32 %v1084, 1.442695
      %v1091 = vpow.pop %v1090
      %v1092 = vmul.f32 %v1085, 1.442695
      %v1093 = vpow.pop %v1092
      %v1094 = vadd.f32 %v1087, 1.0
      %v1095 = vadd.f32 %v1089, 1.0
      %v1096 = vadd.f32 %v1091, 1.0
      %v1097 = vadd.f32 %v1093, 1.0
      %v1098 = vrcp.pop %v1094
      %v1099 = vmul.f32 1.0, %v1098
      %v1100 = vrcp.pop %v1095
      %v1101 = vmul.f32 1.0, %v1100
      %v1102 = vrcp.pop %v1096
      %v1103 = vmul.f32 1.0, %v1102
      %v1104 = vrcp.pop %v1097
      %v1105 = vmul.f32 1.0, %v1104
      %v1106 = vxor.u32 %v973, 2147483648
      %v1107 = vxor.u32 %v979, 2147483648
      %v1108 = vxor.u32 %v985, 2147483648
      %v1109 = vxor.u32 %v991, 2147483648
      %v1110 = vmul.f32 %v1106, 1.442695
      %v1111 = vpow.pop %v1110
      %v1112 = vmul.f32 %v1107, 1.442695
      %v1113 = vpow.pop %v1112
      %v1114 = vmul.f32 %v1108, 1.442695
      %v1115 = vpow.pop %v1114
      %v1116 = vmul.f32 %v1109, 1.442695
      %v1117 = vpow.pop %v1116
      %v1118 = vadd.f32 %v1111, 1.0
      %v1119 = vadd.f32 %v1113, 1.0
      %v1120 = vadd.f32 %v1115, 1.0
      %v1121 = vadd.f32 %v1117, 1.0
      %v1122 = vrcp.pop %v1118
      %v1123 = vmul.f32 1.0, %v1122
      %v1124 = vrcp.pop %v1119
      %v1125 = vmul.f32 1.0, %v1124
      %v1126 = vrcp.pop %v1120
      %v1127 = vmul.f32 1.0, %v1126
      %v1128 = vrcp.pop %v1121
      %v1129 = vmul.f32 1.0, %v1128
      %v1130 = vmul.f32 %v1099, %v1062
      %v1131 = vmul.f32 %v1101, %v1068
      %v1132 = vmul.f32 %v1103, %v1074
      %v1133 = vmul.f32 %v1105, %v1080
      %v1134 = vadd.f32 %v1060, %v1130
      %v1135 = vadd.f32 %v1066, %v1131
      %v1136 = vadd.f32 %v1072, %v1132
      %v1137 = vadd.f32 %v1078, %v1133
      %v1138 = vtanh.pop %v1134
      %v1139 = vtanh.pop %v1135
      %v1140 = vtanh.pop %v1136
      %v1141 = vtanh.pop %v1137
      %v1142 = vsub.f32 1.0, %v1123
      %v1143 = vsub.f32 1.0, %v1125
      %v1144 = vsub.f32 1.0, %v1127
      %v1145 = vsub.f32 1.0, %v1129
      %v1146 = vmul.f32 %v1142, %v1138
      %v1147 = vmul.f32 %v1143, %v1139
      %v1148 = vmul.f32 %v1144, %v1140
      %v1149 = vmul.f32 %v1145, %v1141
      %v1150 = vmul.f32 %v1123, %v304
      %v1151 = vmul.f32 %v1125, %v305
      %v1152 = vmul.f32 %v1127, %v306
      %v1153 = vmul.f32 %v1129, %v307
      %v1154 = vadd.f32 %v1146, %v1150
      %v1155 = vadd.f32 %v1147, %v1151
      %v1156 = vadd.f32 %v1148, %v1152
      %v1157 = vadd.f32 %v1149, %v1153
      %v1158 = vmax.f32 %v1154, 0.0
      %v1159 = vmax.f32 %v1155, 0.0
      %v1160 = vmax.f32 %v1156, 0.0
      %v1161 = vmax.f32 %v1157, 0.0
      %v1162 = vlaneseq
      %v1163 = vshrl.u32 %v1162, 7
      %v1164 = vsub.s32 3, %v1163
      %v1165 = vrot.slane %v312, %v1164
      %v1166 = vmul.f32 %v1158, %v1165
      %v1167 = vmul.f32 %v1159, %v1165
      %v1168 = vmul.f32 %v1160, %v1165
      %v1169 = vmul.f32 %v1161, %v1165
      %v1170 = vlaneseq
      %v1171 = vshrl.u32 %v1170, 7
      %v1172 = vsub.s32 4, %v1171
      %v1173 = vrot.slane %v312, %v1172
      %v1174 = vadd.f32 %v1166, %v1173
      %v1175 = vadd.f32 %v1167, %v1173
      %v1176 = vadd.f32 %v1168, %v1173
      %v1177 = vadd.f32 %v1169, %v1173
      %1178 = vst [vmem:[%s302] sm:$0xff] %v1174
      %1179 = vst [vmem:[%s302 + $0x8] sm:$0xff] %v1175
      %1180 = vst [vmem:[%s302 + $0x10] sm:$0xff] %v1176
      %1181 = vst [vmem:[%s302 + $0x18] sm:$0xff] %v1177
      %s1182 = smul.u32 4, %s18
      %p1183 = scmp.lt.s32.totalorder %s1182, 15
      %s1184 = scalar_select %p1183, %s1182, 15
      %s1185 = smul.addr %s1184, 8
      %s1186 = scalar_lea.vmem %s7, %s1185
      // Predicated region
      $region49: #{gnn_layer.1} parent=47 // pred_check
        %p1187 = pneg %p193
      $region50: #{gnn_layer.1} parent=47 // pred_check_branch
        %1189 = sbr.rel (%p1187) target = $region52
      $region51: #{gnn_layer.1} parent=47 // pred_region
        %s1190 = smul.u32 4, %s18
      $region52: #{gnn_layer.1} parent=47 // pred_fallthru
        _
    $region48: #{gnn_layer.1} parent=5 // pred_fallthru
      _
    %p1191 = scmp.le.s32.totalorder 2, %s13
    // Predicated region
    $region53: #{gnn_layer.1} parent=5 // pred_check
      %p1192 = pneg %p1191
    $region54: #{gnn_layer.1} parent=5 // pred_check_branch
      %1194 = sbr.rel (%p1192) target = $region56
    $region55: #{gnn_layer.1} parent=5 // pred_region
      %s1195 = ssub.s32 %s13, 2
      // Predicated region
      $region57: #{gnn_layer.1} parent=55 // pred_check
        %p1196 = pneg %p199
      $region58: #{gnn_layer.1} parent=55 // pred_check_branch
        %1198 = sbr.rel (%p1196) target = $region60
      $region59: #{gnn_layer.1} parent=55 // pred_region
        %s1199 = smul.u32 4, %s19
        %p1200 = scmp.lt.s32.totalorder %s1199, 15
        %s1201 = scalar_select %p1200, %s1199, 15
        %s1202 = smul.addr %s1201, 8
        %s1203 = scalar_lea.vmem %s7, %s1202
      $region60: #{gnn_layer.1} parent=55 // pred_fallthru
        _
    $region56: #{gnn_layer.1} parent=5 // pred_fallthru
      _
  $region6: #{gnn_layer.1} parent=0 // loop_footer
    %s17 = sadd.s32 1, %s13
  $region7: #{gnn_layer.1} parent=0 // loop_footer_branch
    %12 = sbr.rel target = $region3
  $region8: #{gnn_layer.1} parent=0 // loop_exit
    _

</llo_original>
